<compile_context>
chip_gen: v7x
topology: tpu7x:2x2x1
jax: 0.10.0
libtpu: 0.0.40
codegen_flags: <defaults>
</compile_context>

<pallas_src>
import math

import jax
import jax.numpy as jnp
from jax.experimental import pallas as pl
from jax.experimental.pallas import tpu as pltpu

# ---- small synthetic-encoder config (consistent with the forward semantics) ----
B, S, H = 2, 8, 32          # batch, seq, hidden
NH = 4                      # attention heads
DH = H // NH                # head dim
F = 64                      # FFN hidden
V = 50                      # vocab size
PAD_ID = 1                  # CodeBERT/RoBERTa pad token id (the `.ne(1)` in the module)
LN_EPS = 1e-5

B_TILE = 1                  # one batch row per grid step -> grid=(B,) "parallel" tiles
assert B % B_TILE == 0 and B_TILE == 1
VEC_W = 3 * H               # lane width of the packed bias/LN-vector array (>= F)


def _layernorm(x, gamma, beta):
    mu = jnp.mean(x, axis=-1, keepdims=True)
    var = jnp.mean((x - mu) * (x - mu), axis=-1, keepdims=True)
    return (x - mu) * jax.lax.rsqrt(var + LN_EPS) * gamma + beta


def encoder_pool_kernel(x_ref, mr_ref, wqkv_ref, wo_ref, w1_ref, w2_ref, vec_ref,
                        out_ref):
    """One transformer encoder layer + masked mean pooling + L2 normalize (one batch row)."""
    scale = 1.0 / math.sqrt(DH)

    x = x_ref[...].reshape(S, H)                 # (S, H) f32 (B_TILE == 1)
    x16 = x.astype(jnp.bfloat16)

    # packed bias / LayerNorm vectors (single small DMA)
    vec = vec_ref[...]                           # (8, 3H) f32
    bqkv = vec[0:1, :]                           # (1, 3H) = [bq | bk | bv]
    bo   = vec[1:2, :H]
    g1   = vec[2:3, :H]
    be1  = vec[3:4, :H]
    b1   = vec[4:5, :F]
    b2   = vec[5:6, :H]
    g2   = vec[6:7, :H]
    be2  = vec[7:8, :H]

    mr = mr_ref[...].reshape(2, S)               # packed per-row mask data
    attn_bias = mr[0:1, :]                       # (1, S) additive key mask (0 / -1e9)
    pool_rows = mr[1:2, :]                       # (1, S) mask / clamped count

    # --- fused Q/K/V projection: one (S,H)@(H,3H) MXU matmul, bf16 operands, f32 acc ---
    qkv = jnp.dot(x16, wqkv_ref[...], preferred_element_type=jnp.float32) + bqkv
    qkv16 = qkv.astype(jnp.bfloat16)             # keep activations bf16 for the MXU

    # head-major (NH, S, DH) views of q/k/v.
    # TODO(synk): at real sizes (DH=64) use a head-major projection layout / flash-style
    #             kernel instead of these small lane-slice relayout copies.
    def heads(t):
        base = t * H
        return jnp.concatenate(
            [qkv16[:, base + h * DH: base + (h + 1) * DH].reshape(1, S, DH)
             for h in range(NH)], axis=0)

    qh, kh, vh = heads(0), heads(1), heads(2)    # (NH, S, DH) bf16 each

    # --- all heads at once: leading-batch einsums (no per-head matmuls) ---
    s = jnp.einsum('bqd,bkd->bqk', qh, kh,
                   preferred_element_type=jnp.float32) * scale
    s = s + attn_bias.reshape(1, 1, S)           # broadcast key mask over heads/queries
    s = s - jnp.max(s, axis=-1, keepdims=True)
    p = jnp.exp(s)
    # approx reciprocal (EUP); probabilities sum to ~1 (covered by 5e-2 tolerance)
    p = p * pl.reciprocal(jnp.sum(p, axis=-1, keepdims=True), approx=True)
    ctx = jnp.einsum('bqk,bkd->bqd', p.astype(jnp.bfloat16), vh,
                     preferred_element_type=jnp.float32)          # (NH, S, DH)

    # merge heads back to (S, H) and do ONE output projection with full K=H
    ctx16 = ctx.astype(jnp.bfloat16)
    merged = jnp.concatenate([ctx16[h:h + 1] for h in range(NH)],
                             axis=-1).reshape(S, H)               # (S, H) bf16
    attn = jnp.dot(merged, wo_ref[...], preferred_element_type=jnp.float32) + bo

    h1 = _layernorm(x + attn, g1, be1)                            # (S, H) f32

    # --- feed-forward: two flat matmuls, bf16 operands ---
    ff = jnp.dot(h1.astype(jnp.bfloat16), w1_ref[...],
                 preferred_element_type=jnp.float32) + b1         # (S, F)
    ff = jax.nn.gelu(ff, approximate=True)
    ff = jnp.dot(ff.astype(jnp.bfloat16), w2_ref[...],
                 preferred_element_type=jnp.float32) + b2         # (S, H)
    y = _layernorm(h1 + ff, g2, be2)                              # encoder output

    # --- masked mean pooling as a (1,S)@(S,H) matmul (weights precomputed, count clamped) ---
    pooled = jnp.dot(pool_rows, y, preferred_element_type=jnp.float32)   # (1, H)

    # --- L2 normalize (torch normalize p=2, dim=1, eps=1e-12); single dense store ---
    nsq = jnp.sum(pooled * pooled, axis=-1, keepdims=True)
    out_ref[...] = (pooled * jax.lax.rsqrt(jnp.maximum(nsq, 1e-24))).reshape(1, 1, H)


def init_params(key):
    ks = jax.random.split(key, 10)

    def w(k, shape, scale=0.02):
        return scale * jax.random.normal(k, shape, jnp.float32)

    return dict(
        tok_emb=w(ks[0], (V, H)),
        pos_emb=w(ks[1], (S, H)),
        wq=w(ks[2], (H, H)), bq=jnp.zeros((1, H), jnp.float32),
        wk=w(ks[3], (H, H)), bk=jnp.zeros((1, H), jnp.float32),
        wv=w(ks[4], (H, H)), bv=jnp.zeros((1, H), jnp.float32),
        wo=w(ks[5], (H, H)), bo=jnp.zeros((1, H), jnp.float32),
        g1=jnp.ones((1, H), jnp.float32), be1=jnp.zeros((1, H), jnp.float32),
        w1=w(ks[6], (H, F)), b1=jnp.zeros((1, F), jnp.float32),
        w2=w(ks[7], (F, H)), b2=jnp.zeros((1, H), jnp.float32),
        g2=jnp.ones((1, H), jnp.float32), be2=jnp.zeros((1, H), jnp.float32),
    )


def codebert_forward(code_inputs, params):
    """Equivalent of CodeBERTModel.forward(code_inputs=...). (nl_inputs path is identical math.)"""
    mask = (code_inputs != PAD_ID).astype(jnp.float32)                  # ids.ne(1), (B, S)
    # glue: embedding gather + position embeddings (not the hot path)
    x = params["tok_emb"][code_inputs] + params["pos_emb"][None, :, :]  # (B, S, H)

    # per-row packed mask data: row 0 = additive attention bias, row 1 = pooling weights
    cnt = jnp.maximum(jnp.sum(mask, axis=-1, keepdims=True), 1.0)       # clamp: no all-pad NaN
    mr = jnp.stack([(mask - 1.0) * 1e9, mask / cnt], axis=1)            # (B, 2, S) f32

    bf = jnp.bfloat16
    # weights cast to bf16 on the host (half the DMA bytes, no in-kernel casts)
    wqkv = jnp.concatenate([params["wq"], params["wk"], params["wv"]], axis=1).astype(bf)  # (H, 3H)
    wo = params["wo"].astype(bf)                                        # (H, H)
    w1 = params["w1"].astype(bf)                                        # (H, F)
    w2 = params["w2"].astype(bf)                                        # (F, H)

    def pad_row(v):                                                     # (1, n) -> (1, VEC_W)
        return jnp.pad(v, ((0, 0), (0, VEC_W - v.shape[1])))

    bqkv = jnp.concatenate([params["bq"], params["bk"], params["bv"]], axis=1)  # (1, 3H)
    vecs = jnp.concatenate(
        [bqkv, pad_row(params["bo"]), pad_row(params["g1"]), pad_row(params["be1"]),
         pad_row(params["b1"]), pad_row(params["b2"]), pad_row(params["g2"]),
         pad_row(params["be2"])], axis=0)                               # (8, 3H) f32

    def replicated(shape):       # constant index_map: block fetched once, reused every step
        return pl.BlockSpec(shape, lambda i: (0,) * len(shape))

    grid = (B // B_TILE,)        # (2,) -> pipelined steps + v7x 2-TensorCore sharding
    out = pl.pallas_call(
        encoder_pool_kernel,
        out_shape=jax.ShapeDtypeStruct((B, 1, H), jnp.float32),
        grid=grid,
        in_specs=[pl.BlockSpec((B_TILE, S, H), lambda i: (i, 0, 0)),    # embedded tokens
                  pl.BlockSpec((B_TILE, 2, S), lambda i: (i, 0, 0)),    # bias + pool rows
                  replicated((H, 3 * H)),                               # fused QKV weight (bf16)
                  replicated((H, H)),                                   # output proj (bf16)
                  replicated((H, F)),                                   # FFN in (bf16)
                  replicated((F, H)),                                   # FFN out (bf16)
                  replicated((8, VEC_W))],                              # packed bias/LN vectors
        out_specs=pl.BlockSpec((B_TILE, 1, H), lambda i: (i, 0, 0)),
        compiler_params=pltpu.CompilerParams(dimension_semantics=("parallel",)),
        # TODO(synk): at real CodeBERT sizes set vmem_limit_bytes and lower weight buffering
        #             (pl.Buffered(1)) so bf16 weights + activation tiles fit v7x's 64 MiB.
    )(x, mr, wqkv, wo, w1, w2, vecs)
    return out.reshape(B, H)


def reference_forward(code_inputs, params):
    """Pure-JAX reference mirroring the kernel math (bf16 matmul operands, f32 accumulation)."""
    mask = (code_inputs != PAD_ID).astype(jnp.float32)
    x = params["tok_emb"][code_inputs] + params["pos_emb"][None, :, :]

    def mm(a, b):
        return jnp.dot(a.astype(jnp.bfloat16), b.astype(jnp.bfloat16),
                       preferred_element_type=jnp.float32)

    outs = []
    scale = 1.0 / math.sqrt(DH)
    for b in range(B):
        xb = x[b]
        bias = (mask[b] - 1.0)[None, :] * 1e9
        q = mm(xb, params["wq"]) + params["bq"]
        k = mm(xb, params["wk"]) + params["bk"]
        v = mm(xb, params["wv"]) + params["bv"]
        heads = []
        for h in range(NH):
            qh, kh, vh = (t[:, h * DH:(h + 1) * DH] for t in (q, k, v))
            s = mm(qh, kh.T) * scale + bias
            p = jax.nn.softmax(s, axis=-1)
            heads.append(mm(p, vh))
        attn = mm(jnp.concatenate(heads, axis=-1), params["wo"]) + params["bo"]
        h1 = _layernorm(xb + attn, params["g1"], params["be1"])
        ff = jax.nn.gelu(mm(h1, params["w1"]) + params["b1"], approximate=True)
        ff = mm(ff, params["w2"]) + params["b2"]
        y = _layernorm(h1 + ff, params["g2"], params["be2"])
        m = mask[b][:, None]
        pooled = (y * m).sum(0) / jnp.maximum(m.sum(), 1.0)
        outs.append(pooled / jnp.maximum(jnp.sqrt((pooled ** 2).sum()), 1e-12))
    return jnp.stack(outs)


if __name__ == "__main__":
    key = jax.random.PRNGKey(0)
    pkey, ikey = jax.random.split(key)
    params = init_params(pkey)

    # deterministic token ids with trailing padding (pad id == 1)
    ids = jax.random.randint(ikey, (B, S), 0, V, dtype=jnp.int32)
    ids = ids.at[:, 0].set(0)          # ensure at least one non-pad token per row
    ids = ids.at[0, 6:].set(PAD_ID)
    ids = ids.at[1, 5:].set(PAD_ID)

    out = jax.block_until_ready(codebert_forward(ids, params))
    ref = reference_forward(ids, params)

    assert out.shape == (B, H)
    assert jnp.allclose(out, ref, atol=5e-2, rtol=5e-2), "kernel vs reference mismatch"
    # outputs are L2-normalized rows
    assert jnp.allclose(jnp.linalg.norm(out, axis=1), 1.0, atol=1e-3)

    print("KERNEL_OK")
</pallas_src>

<mosaic_0001>
module attributes {stable_mosaic.version = 11 : i64} {
  func.func @encoder_pool_kernel(%arg0: i32, %arg1: memref<1x8x32xf32, #tpu.memory_space<vmem>>, %arg2: memref<1x2x8xf32, #tpu.memory_space<vmem>>, %arg3: memref<32x96xbf16, #tpu.memory_space<vmem>>, %arg4: memref<32x32xbf16, #tpu.memory_space<vmem>>, %arg5: memref<32x64xbf16, #tpu.memory_space<vmem>>, %arg6: memref<64x32xbf16, #tpu.memory_space<vmem>>, %arg7: memref<8x96xf32, #tpu.memory_space<vmem>>, %arg8: memref<1x1x32xf32, #tpu.memory_space<vmem>>) attributes {dimension_semantics = [#tpu.dimension_semantics<parallel>], iteration_bounds = array<i64: 2>, scalar_prefetch = 0 : i64, scratch_operands = 0 : i64, tpu.core_type = #tpu.core_type<tc>, window_params = [{transform_indices = @transform_0, window_bounds = array<i64: 1, 8, 32>}, {transform_indices = @transform_1, window_bounds = array<i64: 1, 2, 8>}, {pipeline_mode = #tpu.pipeline_mode<synchronous>, transform_indices = @transform_2, window_bounds = array<i64: 32, 96>}, {pipeline_mode = #tpu.pipeline_mode<synchronous>, transform_indices = @transform_3, window_bounds = array<i64: 32, 32>}, {pipeline_mode = #tpu.pipeline_mode<synchronous>, transform_indices = @transform_4, window_bounds = array<i64: 32, 64>}, {pipeline_mode = #tpu.pipeline_mode<synchronous>, transform_indices = @transform_5, window_bounds = array<i64: 64, 32>}, {pipeline_mode = #tpu.pipeline_mode<synchronous>, transform_indices = @transform_6, window_bounds = array<i64: 8, 96>}, {transform_indices = @transform_7, window_bounds = array<i64: 1, 1, 32>}]} {
    %c0 = arith.constant 0 : index
    %c0_0 = arith.constant 0 : index
    %c0_1 = arith.constant 0 : index
    %0 = vector.load %arg1[%c0, %c0_0, %c0_1] : memref<1x8x32xf32, #tpu.memory_space<vmem>>, vector<1x8x32xf32>
    %1 = vector.shape_cast %0 : vector<1x8x32xf32> to vector<8x32xf32>
    %2 = arith.truncf %1 : vector<8x32xf32> to vector<8x32xbf16>
    %c0_2 = arith.constant 0 : index
    %c0_3 = arith.constant 0 : index
    %3 = vector.load %arg7[%c0_2, %c0_3] : memref<8x96xf32, #tpu.memory_space<vmem>>, vector<8x96xf32>
    %4 = vector.extract_strided_slice %3 {offsets = [0, 0], sizes = [1, 96], strides = [1, 1]} : vector<8x96xf32> to vector<1x96xf32>
    %5 = vector.extract_strided_slice %3 {offsets = [1, 0], sizes = [1, 32], strides = [1, 1]} : vector<8x96xf32> to vector<1x32xf32>
    %6 = vector.extract_strided_slice %3 {offsets = [2, 0], sizes = [1, 32], strides = [1, 1]} : vector<8x96xf32> to vector<1x32xf32>
    %7 = vector.extract_strided_slice %3 {offsets = [3, 0], sizes = [1, 32], strides = [1, 1]} : vector<8x96xf32> to vector<1x32xf32>
    %8 = vector.extract_strided_slice %3 {offsets = [4, 0], sizes = [1, 64], strides = [1, 1]} : vector<8x96xf32> to vector<1x64xf32>
    %9 = vector.extract_strided_slice %3 {offsets = [5, 0], sizes = [1, 32], strides = [1, 1]} : vector<8x96xf32> to vector<1x32xf32>
    %10 = vector.extract_strided_slice %3 {offsets = [6, 0], sizes = [1, 32], strides = [1, 1]} : vector<8x96xf32> to vector<1x32xf32>
    %11 = vector.extract_strided_slice %3 {offsets = [7, 0], sizes = [1, 32], strides = [1, 1]} : vector<8x96xf32> to vector<1x32xf32>
    %c0_4 = arith.constant 0 : index
    %c0_5 = arith.constant 0 : index
    %c0_6 = arith.constant 0 : index
    %12 = vector.load %arg2[%c0_4, %c0_5, %c0_6] : memref<1x2x8xf32, #tpu.memory_space<vmem>>, vector<1x2x8xf32>
    %13 = vector.shape_cast %12 : vector<1x2x8xf32> to vector<2x8xf32>
    %14 = vector.extract_strided_slice %13 {offsets = [0, 0], sizes = [1, 8], strides = [1, 1]} : vector<2x8xf32> to vector<1x8xf32>
    %15 = vector.extract_strided_slice %13 {offsets = [1, 0], sizes = [1, 8], strides = [1, 1]} : vector<2x8xf32> to vector<1x8xf32>
    %c0_7 = arith.constant 0 : index
    %c0_8 = arith.constant 0 : index
    %16 = vector.load %arg3[%c0_7, %c0_8] : memref<32x96xbf16, #tpu.memory_space<vmem>>, vector<32x96xbf16>
    %cst = arith.constant dense<0.000000e+00> : vector<8x96xf32>
    %17 = tpu.matmul %2, %16, %cst {dimension_numbers = #tpu.dot_dimension_numbers<[1], [0], [0], [1], [0, 0, 1, 1], [], []>} : vector<8x32xbf16>, vector<32x96xbf16>, vector<8x96xf32> -> vector<8x96xf32>
    %18 = vector.broadcast %4 : vector<1x96xf32> to vector<8x96xf32>
    %19 = arith.addf %17, %18 : vector<8x96xf32>
    %20 = arith.truncf %19 : vector<8x96xf32> to vector<8x96xbf16>
    %21 = vector.extract_strided_slice %20 {offsets = [0, 0], sizes = [8, 8], strides = [1, 1]} : vector<8x96xbf16> to vector<8x8xbf16>
    %22 = vector.shape_cast %21 : vector<8x8xbf16> to vector<1x8x8xbf16>
    %23 = vector.extract_strided_slice %20 {offsets = [0, 8], sizes = [8, 8], strides = [1, 1]} : vector<8x96xbf16> to vector<8x8xbf16>
    %24 = vector.shape_cast %23 : vector<8x8xbf16> to vector<1x8x8xbf16>
    %25 = vector.extract_strided_slice %20 {offsets = [0, 16], sizes = [8, 8], strides = [1, 1]} : vector<8x96xbf16> to vector<8x8xbf16>
    %26 = vector.shape_cast %25 : vector<8x8xbf16> to vector<1x8x8xbf16>
    %27 = vector.extract_strided_slice %20 {offsets = [0, 24], sizes = [8, 8], strides = [1, 1]} : vector<8x96xbf16> to vector<8x8xbf16>
    %28 = vector.shape_cast %27 : vector<8x8xbf16> to vector<1x8x8xbf16>
    %29 = tpu.concatenate %22, %24, %26, %28 in 0 : vector<1x8x8xbf16>, vector<1x8x8xbf16>, vector<1x8x8xbf16>, vector<1x8x8xbf16> -> vector<4x8x8xbf16>
    %30 = vector.extract_strided_slice %20 {offsets = [0, 32], sizes = [8, 8], strides = [1, 1]} : vector<8x96xbf16> to vector<8x8xbf16>
    %31 = vector.shape_cast %30 : vector<8x8xbf16> to vector<1x8x8xbf16>
    %32 = vector.extract_strided_slice %20 {offsets = [0, 40], sizes = [8, 8], strides = [1, 1]} : vector<8x96xbf16> to vector<8x8xbf16>
    %33 = vector.shape_cast %32 : vector<8x8xbf16> to vector<1x8x8xbf16>
    %34 = vector.extract_strided_slice %20 {offsets = [0, 48], sizes = [8, 8], strides = [1, 1]} : vector<8x96xbf16> to vector<8x8xbf16>
    %35 = vector.shape_cast %34 : vector<8x8xbf16> to vector<1x8x8xbf16>
    %36 = vector.extract_strided_slice %20 {offsets = [0, 56], sizes = [8, 8], strides = [1, 1]} : vector<8x96xbf16> to vector<8x8xbf16>
    %37 = vector.shape_cast %36 : vector<8x8xbf16> to vector<1x8x8xbf16>
    %38 = tpu.concatenate %31, %33, %35, %37 in 0 : vector<1x8x8xbf16>, vector<1x8x8xbf16>, vector<1x8x8xbf16>, vector<1x8x8xbf16> -> vector<4x8x8xbf16>
    %39 = vector.extract_strided_slice %20 {offsets = [0, 64], sizes = [8, 8], strides = [1, 1]} : vector<8x96xbf16> to vector<8x8xbf16>
    %40 = vector.shape_cast %39 : vector<8x8xbf16> to vector<1x8x8xbf16>
    %41 = vector.extract_strided_slice %20 {offsets = [0, 72], sizes = [8, 8], strides = [1, 1]} : vector<8x96xbf16> to vector<8x8xbf16>
    %42 = vector.shape_cast %41 : vector<8x8xbf16> to vector<1x8x8xbf16>
    %43 = vector.extract_strided_slice %20 {offsets = [0, 80], sizes = [8, 8], strides = [1, 1]} : vector<8x96xbf16> to vector<8x8xbf16>
    %44 = vector.shape_cast %43 : vector<8x8xbf16> to vector<1x8x8xbf16>
    %45 = vector.extract_strided_slice %20 {offsets = [0, 88], sizes = [8, 8], strides = [1, 1]} : vector<8x96xbf16> to vector<8x8xbf16>
    %46 = vector.shape_cast %45 : vector<8x8xbf16> to vector<1x8x8xbf16>
    %47 = tpu.concatenate %40, %42, %44, %46 in 0 : vector<1x8x8xbf16>, vector<1x8x8xbf16>, vector<1x8x8xbf16>, vector<1x8x8xbf16> -> vector<4x8x8xbf16>
    "tpu.trace_start"() <{level = 10 : i32, message = "bqd,bkd->bqk"}> : () -> ()
    %cst_9 = arith.constant dense<0.000000e+00> : vector<4x8x8xf32>
    %48 = tpu.matmul %29, %38, %cst_9 {dimension_numbers = #tpu.dot_dimension_numbers<[2], [2], [1], [1], [0, 0, 0, 1, 1, 1], [0], [0]>} : vector<4x8x8xbf16>, vector<4x8x8xbf16>, vector<4x8x8xf32> -> vector<4x8x8xf32>
    "tpu.trace_stop"() : () -> ()
    %cst_10 = arith.constant 0.353553385 : f32
    %49 = vector.broadcast %cst_10 : f32 to vector<4x8x8xf32>
    %50 = arith.mulf %48, %49 : vector<4x8x8xf32>
    %51 = vector.shape_cast %14 : vector<1x8xf32> to vector<1x1x8xf32>
    %52 = vector.broadcast %51 : vector<1x1x8xf32> to vector<4x8x8xf32>
    %53 = arith.addf %50, %52 : vector<4x8x8xf32>
    %cst_11 = arith.constant dense<0xFF800000> : vector<4x8xf32>
    %54 = vector.multi_reduction <maximumf>, %53, %cst_11 [2] : vector<4x8x8xf32> to vector<4x8xf32>
    %55 = vector.shape_cast %54 : vector<4x8xf32> to vector<4x8x1xf32>
    %56 = vector.broadcast %55 : vector<4x8x1xf32> to vector<4x8x8xf32>
    %57 = arith.subf %53, %56 : vector<4x8x8xf32>
    %58 = math.exp %57 : vector<4x8x8xf32>
    %cst_12 = arith.constant dense<0.000000e+00> : vector<4x8xf32>
    %59 = vector.multi_reduction <add>, %58, %cst_12 [2] : vector<4x8x8xf32> to vector<4x8xf32>
    %60 = vector.shape_cast %59 : vector<4x8xf32> to vector<4x8x1xf32>
    %61 = tpu.reciprocal %60 {approx = true} : vector<4x8x1xf32> -> vector<4x8x1xf32>
    %62 = vector.broadcast %61 : vector<4x8x1xf32> to vector<4x8x8xf32>
    %63 = arith.mulf %58, %62 : vector<4x8x8xf32>
    %64 = arith.truncf %63 : vector<4x8x8xf32> to vector<4x8x8xbf16>
    "tpu.trace_start"() <{level = 10 : i32, message = "bqk,bkd->bqd"}> : () -> ()
    %cst_13 = arith.constant dense<0.000000e+00> : vector<4x8x8xf32>
    %65 = tpu.matmul %64, %47, %cst_13 {dimension_numbers = #tpu.dot_dimension_numbers<[2], [1], [1], [2], [0, 0, 0, 1, 1, 2], [0], [0]>} : vector<4x8x8xbf16>, vector<4x8x8xbf16>, vector<4x8x8xf32> -> vector<4x8x8xf32>
    "tpu.trace_stop"() : () -> ()
    %66 = arith.truncf %65 : vector<4x8x8xf32> to vector<4x8x8xbf16>
    %67 = vector.extract_strided_slice %66 {offsets = [0, 0, 0], sizes = [1, 8, 8], strides = [1, 1, 1]} : vector<4x8x8xbf16> to vector<1x8x8xbf16>
    %68 = vector.extract_strided_slice %66 {offsets = [1, 0, 0], sizes = [1, 8, 8], strides = [1, 1, 1]} : vector<4x8x8xbf16> to vector<1x8x8xbf16>
    %69 = vector.extract_strided_slice %66 {offsets = [2, 0, 0], sizes = [1, 8, 8], strides = [1, 1, 1]} : vector<4x8x8xbf16> to vector<1x8x8xbf16>
    %70 = vector.extract_strided_slice %66 {offsets = [3, 0, 0], sizes = [1, 8, 8], strides = [1, 1, 1]} : vector<4x8x8xbf16> to vector<1x8x8xbf16>
    %71 = tpu.concatenate %67, %68, %69, %70 in 2 : vector<1x8x8xbf16>, vector<1x8x8xbf16>, vector<1x8x8xbf16>, vector<1x8x8xbf16> -> vector<1x8x32xbf16>
    %72 = vector.shape_cast %71 : vector<1x8x32xbf16> to vector<8x32xbf16>
    %c0_14 = arith.constant 0 : index
    %c0_15 = arith.constant 0 : index
    %73 = vector.load %arg4[%c0_14, %c0_15] : memref<32x32xbf16, #tpu.memory_space<vmem>>, vector<32x32xbf16>
    %cst_16 = arith.constant dense<0.000000e+00> : vector<8x32xf32>
    %74 = tpu.matmul %72, %73, %cst_16 {dimension_numbers = #tpu.dot_dimension_numbers<[1], [0], [0], [1], [0, 0, 1, 1], [], []>} : vector<8x32xbf16>, vector<32x32xbf16>, vector<8x32xf32> -> vector<8x32xf32>
    %75 = vector.broadcast %5 : vector<1x32xf32> to vector<8x32xf32>
    %76 = arith.addf %74, %75 : vector<8x32xf32>
    %77 = arith.addf %1, %76 : vector<8x32xf32>
    %cst_17 = arith.constant dense<0.000000e+00> : vector<8xf32>
    %78 = vector.multi_reduction <add>, %77, %cst_17 [1] : vector<8x32xf32> to vector<8xf32>
    %79 = vector.shape_cast %78 : vector<8xf32> to vector<8x1xf32>
    %cst_18 = arith.constant 3.200000e+01 : f32
    %80 = vector.broadcast %cst_18 : f32 to vector<8x1xf32>
    %81 = arith.divf %79, %80 : vector<8x1xf32>
    %82 = vector.broadcast %81 : vector<8x1xf32> to vector<8x32xf32>
    %83 = arith.subf %77, %82 : vector<8x32xf32>
    %84 = vector.broadcast %81 : vector<8x1xf32> to vector<8x32xf32>
    %85 = arith.subf %77, %84 : vector<8x32xf32>
    %86 = arith.mulf %83, %85 : vector<8x32xf32>
    %cst_19 = arith.constant dense<0.000000e+00> : vector<8xf32>
    %87 = vector.multi_reduction <add>, %86, %cst_19 [1] : vector<8x32xf32> to vector<8xf32>
    %88 = vector.shape_cast %87 : vector<8xf32> to vector<8x1xf32>
    %cst_20 = arith.constant 3.200000e+01 : f32
    %89 = vector.broadcast %cst_20 : f32 to vector<8x1xf32>
    %90 = arith.divf %88, %89 : vector<8x1xf32>
    %91 = vector.broadcast %81 : vector<8x1xf32> to vector<8x32xf32>
    %92 = arith.subf %77, %91 : vector<8x32xf32>
    %cst_21 = arith.constant 9.99999974E-6 : f32
    %93 = vector.broadcast %cst_21 : f32 to vector<8x1xf32>
    %94 = arith.addf %90, %93 : vector<8x1xf32>
    %95 = math.rsqrt %94 : vector<8x1xf32>
    %96 = vector.broadcast %95 : vector<8x1xf32> to vector<8x32xf32>
    %97 = arith.mulf %92, %96 : vector<8x32xf32>
    %98 = vector.broadcast %6 : vector<1x32xf32> to vector<8x32xf32>
    %99 = arith.mulf %97, %98 : vector<8x32xf32>
    %100 = vector.broadcast %7 : vector<1x32xf32> to vector<8x32xf32>
    %101 = arith.addf %99, %100 : vector<8x32xf32>
    %102 = arith.truncf %101 : vector<8x32xf32> to vector<8x32xbf16>
    %c0_22 = arith.constant 0 : index
    %c0_23 = arith.constant 0 : index
    %103 = vector.load %arg5[%c0_22, %c0_23] : memref<32x64xbf16, #tpu.memory_space<vmem>>, vector<32x64xbf16>
    %cst_24 = arith.constant dense<0.000000e+00> : vector<8x64xf32>
    %104 = tpu.matmul %102, %103, %cst_24 {dimension_numbers = #tpu.dot_dimension_numbers<[1], [0], [0], [1], [0, 0, 1, 1], [], []>} : vector<8x32xbf16>, vector<32x64xbf16>, vector<8x64xf32> -> vector<8x64xf32>
    %105 = vector.broadcast %8 : vector<1x64xf32> to vector<8x64xf32>
    %106 = arith.addf %104, %105 : vector<8x64xf32>
    %107 = arith.mulf %106, %106 : vector<8x64xf32>
    %108 = arith.mulf %106, %107 : vector<8x64xf32>
    %cst_25 = arith.constant 4.471500e-02 : f32
    %109 = vector.broadcast %cst_25 : f32 to vector<8x64xf32>
    %110 = arith.mulf %109, %108 : vector<8x64xf32>
    %111 = arith.addf %106, %110 : vector<8x64xf32>
    %cst_26 = arith.constant 0.797884583 : f32
    %112 = vector.broadcast %cst_26 : f32 to vector<8x64xf32>
    %113 = arith.mulf %112, %111 : vector<8x64xf32>
    %114 = math.tanh %113 : vector<8x64xf32>
    %cst_27 = arith.constant 1.000000e+00 : f32
    %115 = vector.broadcast %cst_27 : f32 to vector<8x64xf32>
    %116 = arith.addf %115, %114 : vector<8x64xf32>
    %cst_28 = arith.constant 5.000000e-01 : f32
    %117 = vector.broadcast %cst_28 : f32 to vector<8x64xf32>
    %118 = arith.mulf %117, %116 : vector<8x64xf32>
    %119 = arith.mulf %106, %118 : vector<8x64xf32>
    %120 = arith.truncf %119 : vector<8x64xf32> to vector<8x64xbf16>
    %c0_29 = arith.constant 0 : index
    %c0_30 = arith.constant 0 : index
    %121 = vector.load %arg6[%c0_29, %c0_30] : memref<64x32xbf16, #tpu.memory_space<vmem>>, vector<64x32xbf16>
    %cst_31 = arith.constant dense<0.000000e+00> : vector<8x32xf32>
    %122 = tpu.matmul %120, %121, %cst_31 {dimension_numbers = #tpu.dot_dimension_numbers<[1], [0], [0], [1], [0, 0, 1, 1], [], []>} : vector<8x64xbf16>, vector<64x32xbf16>, vector<8x32xf32> -> vector<8x32xf32>
    %123 = vector.broadcast %9 : vector<1x32xf32> to vector<8x32xf32>
    %124 = arith.addf %122, %123 : vector<8x32xf32>
    %125 = arith.addf %101, %124 : vector<8x32xf32>
    %cst_32 = arith.constant dense<0.000000e+00> : vector<8xf32>
    %126 = vector.multi_reduction <add>, %125, %cst_32 [1] : vector<8x32xf32> to vector<8xf32>
    %127 = vector.shape_cast %126 : vector<8xf32> to vector<8x1xf32>
    %cst_33 = arith.constant 3.200000e+01 : f32
    %128 = vector.broadcast %cst_33 : f32 to vector<8x1xf32>
    %129 = arith.divf %127, %128 : vector<8x1xf32>
    %130 = vector.broadcast %129 : vector<8x1xf32> to vector<8x32xf32>
    %131 = arith.subf %125, %130 : vector<8x32xf32>
    %132 = vector.broadcast %129 : vector<8x1xf32> to vector<8x32xf32>
    %133 = arith.subf %125, %132 : vector<8x32xf32>
    %134 = arith.mulf %131, %133 : vector<8x32xf32>
    %cst_34 = arith.constant dense<0.000000e+00> : vector<8xf32>
    %135 = vector.multi_reduction <add>, %134, %cst_34 [1] : vector<8x32xf32> to vector<8xf32>
    %136 = vector.shape_cast %135 : vector<8xf32> to vector<8x1xf32>
    %cst_35 = arith.constant 3.200000e+01 : f32
    %137 = vector.broadcast %cst_35 : f32 to vector<8x1xf32>
    %138 = arith.divf %136, %137 : vector<8x1xf32>
    %139 = vector.broadcast %129 : vector<8x1xf32> to vector<8x32xf32>
    %140 = arith.subf %125, %139 : vector<8x32xf32>
    %cst_36 = arith.constant 9.99999974E-6 : f32
    %141 = vector.broadcast %cst_36 : f32 to vector<8x1xf32>
    %142 = arith.addf %138, %141 : vector<8x1xf32>
    %143 = math.rsqrt %142 : vector<8x1xf32>
    %144 = vector.broadcast %143 : vector<8x1xf32> to vector<8x32xf32>
    %145 = arith.mulf %140, %144 : vector<8x32xf32>
    %146 = vector.broadcast %10 : vector<1x32xf32> to vector<8x32xf32>
    %147 = arith.mulf %145, %146 : vector<8x32xf32>
    %148 = vector.broadcast %11 : vector<1x32xf32> to vector<8x32xf32>
    %149 = arith.addf %147, %148 : vector<8x32xf32>
    %cst_37 = arith.constant dense<0.000000e+00> : vector<1x32xf32>
    %150 = tpu.matmul %15, %149, %cst_37 {dimension_numbers = #tpu.dot_dimension_numbers<[1], [0], [0], [1], [0, 0, 1, 1], [], []>} : vector<1x8xf32>, vector<8x32xf32>, vector<1x32xf32> -> vector<1x32xf32>
    %151 = arith.mulf %150, %150 : vector<1x32xf32>
    %cst_38 = arith.constant dense<0.000000e+00> : vector<1xf32>
    %152 = vector.multi_reduction <add>, %151, %cst_38 [1] : vector<1x32xf32> to vector<1xf32>
    %153 = vector.shape_cast %152 : vector<1xf32> to vector<1x1xf32>
    %cst_39 = arith.constant 1.000000e-24 : f32
    %154 = vector.broadcast %cst_39 : f32 to vector<1x1xf32>
    %155 = arith.maximumf %153, %154 : vector<1x1xf32>
    %156 = math.rsqrt %155 : vector<1x1xf32>
    %157 = vector.broadcast %156 : vector<1x1xf32> to vector<1x32xf32>
    %158 = arith.mulf %150, %157 : vector<1x32xf32>
    %159 = vector.shape_cast %158 : vector<1x32xf32> to vector<1x1x32xf32>
    %c0_40 = arith.constant 0 : index
    %c0_41 = arith.constant 0 : index
    %c0_42 = arith.constant 0 : index
    %160 = vector.load %arg8[%c0_40, %c0_41, %c0_42] : memref<1x1x32xf32, #tpu.memory_space<vmem>>, vector<1x1x32xf32>
    tpu.vector_store %arg8[%c0_40, %c0_41, %c0_42], %159 {strides = array<i32>} : memref<1x1x32xf32, #tpu.memory_space<vmem>>, vector<1x1x32xf32>,
    return
  }
  func.func @transform_0(%arg0: i32) -> (i32, i32, i32) {
    %c0_i32 = arith.constant 0 : i32
    %c0_i32_0 = arith.constant 0 : i32
    %c0_i32_1 = arith.constant 0 : i32
    return %arg0, %c0_i32, %c0_i32_0 : i32, i32, i32
  }
  func.func @transform_1(%arg0: i32) -> (i32, i32, i32) {
    %c0_i32 = arith.constant 0 : i32
    %c0_i32_0 = arith.constant 0 : i32
    %c0_i32_1 = arith.constant 0 : i32
    return %arg0, %c0_i32, %c0_i32_0 : i32, i32, i32
  }
  func.func @transform_2(%arg0: i32) -> (i32, i32) {
    %c0_i32 = arith.constant 0 : i32
    %c0_i32_0 = arith.constant 0 : i32
    %c0_i32_1 = arith.constant 0 : i32
    return %c0_i32, %c0_i32_0 : i32, i32
  }
  func.func @transform_3(%arg0: i32) -> (i32, i32) {
    %c0_i32 = arith.constant 0 : i32
    %c0_i32_0 = arith.constant 0 : i32
    %c0_i32_1 = arith.constant 0 : i32
    return %c0_i32, %c0_i32_0 : i32, i32
  }
  func.func @transform_4(%arg0: i32) -> (i32, i32) {
    %c0_i32 = arith.constant 0 : i32
    %c0_i32_0 = arith.constant 0 : i32
    %c0_i32_1 = arith.constant 0 : i32
    return %c0_i32, %c0_i32_0 : i32, i32
  }
  func.func @transform_5(%arg0: i32) -> (i32, i32) {
    %c0_i32 = arith.constant 0 : i32
    %c0_i32_0 = arith.constant 0 : i32
    %c0_i32_1 = arith.constant 0 : i32
    return %c0_i32, %c0_i32_0 : i32, i32
  }
  func.func @transform_6(%arg0: i32) -> (i32, i32) {
    %c0_i32 = arith.constant 0 : i32
    %c0_i32_0 = arith.constant 0 : i32
    %c0_i32_1 = arith.constant 0 : i32
    return %c0_i32, %c0_i32_0 : i32, i32
  }
  func.func @transform_7(%arg0: i32) -> (i32, i32, i32) {
    %c0_i32 = arith.constant 0 : i32
    %c0_i32_0 = arith.constant 0 : i32
    %c0_i32_1 = arith.constant 0 : i32
    return %arg0, %c0_i32, %c0_i32_0 : i32, i32, i32
  }
}

</mosaic_0001>

<llo_original>
// kernel: tpu_custom_call.1
$region0: #{tpu_custom_call.1}
  #allocation0 [shape = 'u32[]', space=smem, size = 0x4, offset = 0x4, fixed_abs, tag = 'smem constant byte address 0x4 - core index']
  #allocation1 [shape = 'u32[144,128]{1,0:T(1,128)}', space=vmem, size = 0x12000, scoped, tag = 'internal scratch']
  %s0 = inlined_call_operand.vmem [shape: f32[2,8,32], index: 0, kind: input, shape index: {}]
  %s1 = inlined_call_operand.hbm [shape: f32[2,2,8], index: 1, kind: input, shape index: {}]
  %s2 = inlined_call_operand.vmem [shape: bf16[32,96], index: 2, kind: input, shape index: {}]
  %s3 = inlined_call_operand.vmem [shape: bf16[32,32], index: 3, kind: input, shape index: {}]
  %s4 = inlined_call_operand.hbm [shape: bf16[32,64], index: 4, kind: input, shape index: {}]
  %s5 = inlined_call_operand.vmem [shape: bf16[64,32], index: 5, kind: input, shape index: {}]
  %s6 = inlined_call_operand.hbm [shape: f32[8,96], index: 6, kind: input, shape index: {}]
  %s7 = inlined_call_operand.hbm [shape: f32[2,1,32], index: 7, kind: output, shape index: {}]
  %s8 = sld [smem:[#allocation0]]
  $region73: #{tpu_custom_call.1} parent=0
    _
  %s10 = ssub.s32 1, %s8
  %s11 = scalar_select 0, %s10, %s8
  $region1: #{tpu_custom_call.1} parent=0
    #allocation2 [shape = 'u8[2048]{0}', space=vmem, size = 0x800, scoped, tag = 'input window, operand 1']
    #allocation3 [shape = 's32[2]{0}', space=sflag, size = 0x8, scoped, tag = 'scoped memory for tpu_custom_call.1']
    #allocation4 [shape = 's32[2]{0}', space=sflag, size = 0x8, scoped, tag = 'scoped memory for tpu_custom_call.1']
    #allocation5 [shape = 'u8[8192]{0}', space=vmem, size = 0x2000, scoped, tag = 'input window, operand 4, single buffered']
    #allocation6 [shape = 's32[1]{0}', space=sflag, size = 0x4, scoped, tag = 'scoped memory for tpu_custom_call.1']
    #allocation7 [shape = 'u8[4096]{0}', space=vmem, size = 0x1000, scoped, tag = 'input window, operand 6, single buffered']
    #allocation8 [shape = 'u8[1024]{0}', space=vmem, size = 0x400, scoped, tag = 'output window, operand 0']
    %12 = vsyncpa [#allocation3], 0
    %s13 = scalar_lea.sflag [#allocation3], 1
    %14 = vsyncpa %s13, 0
    %15 = vsyncpa [#allocation6], 0
    %16 = vsyncpa [#allocation4], 0
    %s17 = scalar_lea.sflag [#allocation4], 1
    %18 = vsyncpa %s17, 0
    loop: start=0, step=1, limit=4
    $region2: #{tpu_custom_call.1} parent=1 // loop_pre_header
      _
    $region3: #{tpu_custom_call.1} parent=1 // loop_header
      %s20 = sphi 0, %s24
      %p21 = scmp.ge.s32.totalorder %s20, 4
      %s30 = sphi 0, %s32
      %s33 = sphi 0, %s30
      %s34 = sphi 0, %s33
      %s50 = sphi 0, %s34
      %s56 = sphi 0, %s58
      %s59 = sphi 0, %s56
      %s60 = sphi 0, %s59
      %s76 = sphi 0, %s60
      %s80 = sphi 0, %s80
      %s82 = sphi 0, %s80
      %s83 = sphi 0, %s82
      %s97 = sphi 0, %s83
      %s101 = sphi 0, %s101
      %s103 = sphi 0, %s101
      %s104 = sphi 0, %s103
      %s118 = sphi 0, %s104
      %s122 = sphi 0, %s122
      %s124 = sphi 0, %s122
      %s125 = sphi 0, %s124
      %s139 = sphi 0, %s125
      %s143 = sphi 0, %s143
      %s145 = sphi 0, %s143
      %s146 = sphi 0, %s145
      %s160 = sphi 0, %s146
      %s164 = sphi 0, %s164
      %s166 = sphi 0, %s164
      %s167 = sphi 0, %s166
      %s181 = sphi 0, %s167
      %s187 = sphi 0, %s189
      %s190 = sphi 0, %s187
      %s191 = sphi 0, %s190
      %s207 = sphi 0, %s191
    $region4: #{tpu_custom_call.1} parent=1 // loop_header_branch
      %23 = sbr.rel (%p21) target = $region8
    $region5: #{tpu_custom_call.1} parent=1 // loop_body
      %s25 = ssub.s32 %s20, 1
      %s26 = ssub.s32 %s20, 2
      %s27 = sadd.s32 %s20, 1
      %s28 = ssub.s32 %s20, %s27
      %p29 = scmp.eq.s32.totalorder %s28, 0
      %s31 = sadd.s32 %s30, 1
      %s32 = scalar_select %p29, %s30, %s31
      %p35 = pneg %p29
      %p36 = scmp.eq.s32.totalorder %s20, 1
      %p37 = por %p35, %p36
      %p38 = scmp.ne.s32.totalorder %s30, %s33
      %p39 = scmp.eq.s32.totalorder %s20, 0
      %p40 = por %p38, %p39
      %p41 = scmp.ne.s32.totalorder %s30, %s33
      %p42 = scmp.eq.s32.totalorder %s25, 1
      %p43 = por %p41, %p42
      %p44 = scmp.ne.s32.totalorder %s33, %s34
      %p45 = scmp.eq.s32.totalorder %s25, 0
      %p46 = por %p44, %p45
      %p47 = scmp.ne.s32.totalorder %s33, %s34
      %p48 = scmp.eq.s32.totalorder %s26, 1
      %p49 = por %p47, %p48
      %p51 = scmp.ne.s32.totalorder %s34, %s50
      %p52 = scmp.eq.s32.totalorder %s26, 0
      %p53 = por %p51, %p52
      %s54 = ssub.s32 %s20, %s27
      %p55 = scmp.eq.s32.totalorder %s54, 0
      %s57 = sadd.s32 %s56, 1
      %s58 = scalar_select %p55, %s56, %s57
      %p61 = pneg %p55
      %p62 = scmp.eq.s32.totalorder %s20, 1
      %p63 = por %p61, %p62
      %p64 = scmp.ne.s32.totalorder %s56, %s59
      %p65 = scmp.eq.s32.totalorder %s20, 0
      %p66 = por %p64, %p65
      %p67 = scmp.ne.s32.totalorder %s56, %s59
      %p68 = scmp.eq.s32.totalorder %s25, 1
      %p69 = por %p67, %p68
      %p70 = scmp.ne.s32.totalorder %s59, %s60
      %p71 = scmp.eq.s32.totalorder %s25, 0
      %p72 = por %p70, %p71
      %p73 = scmp.ne.s32.totalorder %s59, %s60
      %p74 = scmp.eq.s32.totalorder %s26, 1
      %p75 = por %p73, %p74
      %p77 = scmp.ne.s32.totalorder %s60, %s76
      %p78 = scmp.eq.s32.totalorder %s26, 0
      %p79 = por %p77, %p78
      %s81 = sadd.s32 %s80, 1
      %p84 = scmp.eq.s32.totalorder %s20, 1
      %p85 = scmp.ne.s32.totalorder %s80, %s82
      %p86 = scmp.eq.s32.totalorder %s20, 0
      %p87 = por %p85, %p86
      %p88 = scmp.ne.s32.totalorder %s80, %s82
      %p89 = scmp.eq.s32.totalorder %s25, 1
      %p90 = por %p88, %p89
      %p91 = scmp.ne.s32.totalorder %s82, %s83
      %p92 = scmp.eq.s32.totalorder %s25, 0
      %p93 = por %p91, %p92
      %p94 = scmp.ne.s32.totalorder %s82, %s83
      %p95 = scmp.eq.s32.totalorder %s26, 1
      %p96 = por %p94, %p95
      %p98 = scmp.ne.s32.totalorder %s83, %s97
      %p99 = scmp.eq.s32.totalorder %s26, 0
      %p100 = por %p98, %p99
      %s102 = sadd.s32 %s101, 1
      %p105 = scmp.eq.s32.totalorder %s20, 1
      %p106 = scmp.ne.s32.totalorder %s101, %s103
      %p107 = scmp.eq.s32.totalorder %s20, 0
      %p108 = por %p106, %p107
      %p109 = scmp.ne.s32.totalorder %s101, %s103
      %p110 = scmp.eq.s32.totalorder %s25, 1
      %p111 = por %p109, %p110
      %p112 = scmp.ne.s32.totalorder %s103, %s104
      %p113 = scmp.eq.s32.totalorder %s25, 0
      %p114 = por %p112, %p113
      %p115 = scmp.ne.s32.totalorder %s103, %s104
      %p116 = scmp.eq.s32.totalorder %s26, 1
      %p117 = por %p115, %p116
      %p119 = scmp.ne.s32.totalorder %s104, %s118
      %p120 = scmp.eq.s32.totalorder %s26, 0
      %p121 = por %p119, %p120
      %s123 = sadd.s32 %s122, 1
      %p126 = scmp.eq.s32.totalorder %s20, 1
      %p127 = scmp.ne.s32.totalorder %s122, %s124
      %p128 = scmp.eq.s32.totalorder %s20, 0
      %p129 = por %p127, %p128
      %p130 = scmp.ne.s32.totalorder %s122, %s124
      %p131 = scmp.eq.s32.totalorder %s25, 1
      %p132 = por %p130, %p131
      %p133 = scmp.ne.s32.totalorder %s124, %s125
      %p134 = scmp.eq.s32.totalorder %s25, 0
      %p135 = por %p133, %p134
      %p136 = scmp.ne.s32.totalorder %s124, %s125
      %p137 = scmp.eq.s32.totalorder %s26, 1
      %p138 = por %p136, %p137
      %p140 = scmp.ne.s32.totalorder %s125, %s139
      %p141 = scmp.eq.s32.totalorder %s26, 0
      %p142 = por %p140, %p141
      %s144 = sadd.s32 %s143, 1
      %p147 = scmp.eq.s32.totalorder %s20, 1
      %p148 = scmp.ne.s32.totalorder %s143, %s145
      %p149 = scmp.eq.s32.totalorder %s20, 0
      %p150 = por %p148, %p149
      %p151 = scmp.ne.s32.totalorder %s143, %s145
      %p152 = scmp.eq.s32.totalorder %s25, 1
      %p153 = por %p151, %p152
      %p154 = scmp.ne.s32.totalorder %s145, %s146
      %p155 = scmp.eq.s32.totalorder %s25, 0
      %p156 = por %p154, %p155
      %p157 = scmp.ne.s32.totalorder %s145, %s146
      %p158 = scmp.eq.s32.totalorder %s26, 1
      %p159 = por %p157, %p158
      %p161 = scmp.ne.s32.totalorder %s146, %s160
      %p162 = scmp.eq.s32.totalorder %s26, 0
      %p163 = por %p161, %p162
      %s165 = sadd.s32 %s164, 1
      %p168 = scmp.eq.s32.totalorder %s20, 1
      %p169 = scmp.ne.s32.totalorder %s164, %s166
      %p170 = scmp.eq.s32.totalorder %s20, 0
      %p171 = por %p169, %p170
      %p172 = scmp.ne.s32.totalorder %s164, %s166
      %p173 = scmp.eq.s32.totalorder %s25, 1
      %p174 = por %p172, %p173
      %p175 = scmp.ne.s32.totalorder %s166, %s167
      %p176 = scmp.eq.s32.totalorder %s25, 0
      %p177 = por %p175, %p176
      %p178 = scmp.ne.s32.totalorder %s166, %s167
      %p179 = scmp.eq.s32.totalorder %s26, 1
      %p180 = por %p178, %p179
      %p182 = scmp.ne.s32.totalorder %s167, %s181
      %p183 = scmp.eq.s32.totalorder %s26, 0
      %p184 = por %p182, %p183
      %s185 = ssub.s32 %s20, %s27
      %p186 = scmp.eq.s32.totalorder %s185, 0
      %s188 = sadd.s32 %s187, 1
      %s189 = scalar_select %p186, %s187, %s188
      %p192 = pneg %p186
      %p193 = scmp.eq.s32.totalorder %s20, 1
      %p194 = por %p192, %p193
      %p195 = scmp.ne.s32.totalorder %s187, %s190
      %p196 = scmp.eq.s32.totalorder %s20, 0
      %p197 = por %p195, %p196
      %p198 = scmp.ne.s32.totalorder %s187, %s190
      %p199 = scmp.eq.s32.totalorder %s25, 1
      %p200 = por %p198, %p199
      %p201 = scmp.ne.s32.totalorder %s190, %s191
      %p202 = scmp.eq.s32.totalorder %s25, 0
      %p203 = por %p201, %p202
      %p204 = scmp.ne.s32.totalorder %s190, %s191
      %p205 = scmp.eq.s32.totalorder %s26, 1
      %p206 = por %p204, %p205
      %p208 = scmp.ne.s32.totalorder %s191, %s207
      %p209 = scmp.eq.s32.totalorder %s26, 0
      %p210 = por %p208, %p209
      %p211 = scmp.le.s32.totalorder 1, %s20
      %p212 = scmp.lt.s32.totalorder %s20, 3
      %p213 = pnand %p211, %p212
      %p214 = pneg %p213
      // Predicated region
      $region9: #{tpu_custom_call.1} parent=5 // pred_check
        _
      $region10: #{tpu_custom_call.1} parent=5 // pred_check_branch
        %216 = sbr.rel (%p213) target = $region12
      $region11: #{tpu_custom_call.1} parent=5 // pred_region
        %s217 = ssub.s32 %s20, 1
        // Predicated region
        $region13: #{tpu_custom_call.1} parent=11 // pred_check
          %p218 = pneg %p93
        $region14: #{tpu_custom_call.1} parent=11 // pred_check_branch
          %220 = sbr.rel (%p218) target = $region16
        $region15: #{tpu_custom_call.1} parent=11 // pred_region
          _
        $region16: #{tpu_custom_call.1} parent=11 // pred_fallthru
          _
        // Predicated region
        $region17: #{tpu_custom_call.1} parent=11 // pred_check
          %p221 = pneg %p114
        $region18: #{tpu_custom_call.1} parent=11 // pred_check_branch
          %223 = sbr.rel (%p221) target = $region20
        $region19: #{tpu_custom_call.1} parent=11 // pred_region
          _
        $region20: #{tpu_custom_call.1} parent=11 // pred_fallthru
          _
        // Predicated region
        $region21: #{tpu_custom_call.1} parent=11 // pred_check
          %p224 = pneg %p135
        $region22: #{tpu_custom_call.1} parent=11 // pred_check_branch
          %226 = sbr.rel (%p224) target = $region24
        $region23: #{tpu_custom_call.1} parent=11 // pred_region
          %s228 = ssub.s32 256, 256
          %229 = vsyncadd [#allocation6], %s228
          %s230 = sshll.u32 [#allocation5], 4
          %s231 = int_to_ptr.vmem [resolvable:$true] %s230
          %236 = dma.hbm_to_vmem [thread:$0]  %s4, 256, %s231, [#allocation6], 64, 64, 4
        $region24: #{tpu_custom_call.1} parent=11 // pred_fallthru
          _
        // Predicated region
        $region25: #{tpu_custom_call.1} parent=11 // pred_check
          %p237 = pneg %p156
        $region26: #{tpu_custom_call.1} parent=11 // pred_check_branch
          %239 = sbr.rel (%p237) target = $region28
        $region27: #{tpu_custom_call.1} parent=11 // pred_region
          _
        $region28: #{tpu_custom_call.1} parent=11 // pred_fallthru
          _
        // Predicated region
        $region29: #{tpu_custom_call.1} parent=11 // pred_check
          %p240 = pneg %p177
        $region30: #{tpu_custom_call.1} parent=11 // pred_check_branch
          %242 = sbr.rel (%p240) target = $region32
        $region31: #{tpu_custom_call.1} parent=11 // pred_region
          %s244 = ssub.s32 128, 128
          %245 = vsyncadd [#allocation6], %s244
          %s247 = sshll.u32 [#allocation7], 4
          %s248 = int_to_ptr.vmem [resolvable:$true] %s247
          %250 = dma.hbm_to_vmem [thread:$0]  %s6, 128, %s248, [#allocation6]
        $region32: #{tpu_custom_call.1} parent=11 // pred_fallthru
          _
      $region12: #{tpu_custom_call.1} parent=5 // pred_fallthru
        _
      %p251 = scmp.lt.s32.totalorder %s20, 2
      // Predicated region
      $region33: #{tpu_custom_call.1} parent=5 // pred_check
        %p252 = pneg %p251
      $region34: #{tpu_custom_call.1} parent=5 // pred_check_branch
        %254 = sbr.rel (%p252) target = $region36
      $region35: #{tpu_custom_call.1} parent=5 // pred_region
        // Predicated region
        $region37: #{tpu_custom_call.1} parent=35 // pred_check
          %p255 = pneg %p40
        $region38: #{tpu_custom_call.1} parent=35 // pred_check_branch
          %257 = sbr.rel (%p255) target = $region40
        $region39: #{tpu_custom_call.1} parent=35 // pred_region
          %p258 = scmp.lt.s32.totalorder %s20, 1
          %s259 = scalar_select %p258, %s20, 1
          %s260 = smul.addr %s259, 8
          %s261 = scalar_lea.vmem %s0, %s260
        $region40: #{tpu_custom_call.1} parent=35 // pred_fallthru
          _
        // Predicated region
        $region41: #{tpu_custom_call.1} parent=35 // pred_check
          %p262 = pneg %p66
        $region42: #{tpu_custom_call.1} parent=35 // pred_check_branch
          %264 = sbr.rel (%p262) target = $region44
        $region43: #{tpu_custom_call.1} parent=35 // pred_region
          %s265 = sand.u32 %s56, 1
          %s266 = scalar_lea.sflag [#allocation3], %s265
          %s267 = sand.u32 %s56, 1
          %s268 = smul.addr %s267, 2
          %s269 = scalar_lea.vmem [#allocation2], %s268
          %s271 = ssub.s32 32, 32
          %272 = vsyncadd %s266, %s271
          %s273 = smul.addr %s20, 32
          %s274 = scalar_lea.hbm %s1, %s273
          %s276 = sshll.u32 %s269, 4
          %s277 = int_to_ptr.vmem [resolvable:$true] %s276
          %279 = dma.hbm_to_vmem [thread:$0]  %s274, 32, %s277, %s266
        $region44: #{tpu_custom_call.1} parent=35 // pred_fallthru
          _
      $region36: #{tpu_custom_call.1} parent=5 // pred_fallthru
        _
      %p280 = scmp.le.s32.totalorder 1, %s20
      %p281 = scmp.lt.s32.totalorder %s20, 3
      %p282 = pnand %p280, %p281
      %p283 = pneg %p282
      // Predicated region
      $region45: #{tpu_custom_call.1} parent=5 // pred_check
        _
      $region46: #{tpu_custom_call.1} parent=5 // pred_check_branch
        %285 = sbr.rel (%p282) target = $region48
      $region47: #{tpu_custom_call.1} parent=5 // pred_region
        %s286 = ssub.s32 %s20, 1
        %s287 = sand.u32 %s59, 1
        %s288 = scalar_lea.sflag [#allocation3], %s287
        %s289 = sand.u32 %s59, 1
        %s290 = smul.addr %s289, 2
        %s291 = scalar_lea.vmem [#allocation2], %s290
        // Predicated region
        $region49: #{tpu_custom_call.1} parent=47 // pred_check
          %p292 = pneg %p72
        $region50: #{tpu_custom_call.1} parent=47 // pred_check_branch
          %294 = sbr.rel (%p292) target = $region52
        $region51: #{tpu_custom_call.1} parent=47 // pred_region
          %295 = dma.done %s288, 32
        $region52: #{tpu_custom_call.1} parent=47 // pred_fallthru
          _
        // Predicated region
        $region53: #{tpu_custom_call.1} parent=47 // pred_check
          %p296 = pneg %p135
        $region54: #{tpu_custom_call.1} parent=47 // pred_check_branch
          %298 = sbr.rel (%p296) target = $region56
        $region55: #{tpu_custom_call.1} parent=47 // pred_region
          %299 = dma.done [#allocation6], 256
        $region56: #{tpu_custom_call.1} parent=47 // pred_fallthru
          _
        // Predicated region
        $region57: #{tpu_custom_call.1} parent=47 // pred_check
          %p300 = pneg %p177
        $region58: #{tpu_custom_call.1} parent=47 // pred_check_branch
          %302 = sbr.rel (%p300) target = $region60
        $region59: #{tpu_custom_call.1} parent=47 // pred_region
          %303 = dma.done [#allocation6], 128
        $region60: #{tpu_custom_call.1} parent=47 // pred_fallthru
          _
        %p304 = scmp.lt.s32.totalorder %s25, 1
        %s305 = scalar_select %p304, %s25, 1
        %s306 = smul.addr %s305, 8
        %s307 = scalar_lea.vmem %s0, %s306
        %p308 = pneg %p46
        %p309 = pneg %p43
        %s310 = sand.u32 %s59, 1
        %s311 = scalar_lea.sflag [#allocation3], %s310
        %s312 = sand.u32 %s59, 1
        %s313 = smul.addr %s312, 2
        %s314 = scalar_lea.vmem [#allocation2], %s313
        %p315 = pneg %p72
        %p316 = pneg %p69
        %p317 = pneg %p93
        %p318 = pneg %p90
        %p319 = pneg %p114
        %p320 = pneg %p111
        %p321 = pneg %p135
        %p322 = pneg %p132
        %p323 = pneg %p156
        %p324 = pneg %p153
        %p325 = pneg %p177
        %p326 = pneg %p174
        %p327 = pneg %p203
        %p328 = pneg %p200
        %s329 = sand.u32 %s190, 1
        %s330 = scalar_lea.sflag [#allocation4], %s329
        %s331 = sand.u32 %s190, 1
        %s332 = scalar_lea.vmem [#allocation8], %s331
        %p333 = scmp.lt.s32.totalorder %s25, 1
        %s334 = scalar_select %p333, %s25, 1
        %s335 = smul.addr %s334, 8
        %s336 = scalar_lea.vmem %s0, %s335
        %v338 = vld [vmem:[%s336] sm:$0xff]
        %v339 = vpack.c.bf16 %v338, %v338
        %v340 = vld [vmem:[#allocation7] sm:$0xff]
        %v341 = vld [vmem:[%s291] sm:$0x3]
        %v342 = vld [vmem:[%s2] sm:$0xf]
        %v343 = vld [vmem:[%s2 + $0x4] sm:$0xf]
        %v344 = vld [vmem:[%s2 + $0x8] sm:$0xf]
        %v345 = vld [vmem:[%s2 + $0xc] sm:$0xf]
        %v346 = vlaneseq
        %v347 = vshrl.u32 %v346, 7
        %v348 = vsub.s32 0, %v347
        %v349 = vrot.slane %v340, %v348
        %v354 = vunpack.c.l.b16 %v342
        %v355 = vunpack.c.l.b16 %v343
        %v356 = vunpack.c.l.b16 %v344
        %v357 = vunpack.c.l.b16 %v345
        %v358 = vpack.c.b16 %v355, %v354
        %v359 = vpack.c.b16 %v357, %v356
        %vm362 = vcmask 261120
        %v364 = vsel %vm362, %v339, 0
        %366 = vmatprep.subr.bf16.mxu0 0
        %367 = vmatpush1.bf16.msra.mxu0 %v358
        %368 = vmatprep.subr.bf16.mxu0 0
        %369 = vmatpush1.bf16.msra.mxu0 %v359
        %370 = vmatprep.subr.bf16.mxu0 0
        %371 = vmatpush1.bf16.msra.mxu0 0
        %372 = vmatprep.subr.bf16.mxu0 0
        %373 = vmatpush1.bf16.msra.mxu0 0
        %374 = vmatprep.subr.bf16.mxu0 0
        %375 = vmatpush1.bf16.msra.mxu0 0
        %376 = vmatprep.subr.bf16.mxu0 0
        %377 = vmatpush1.bf16.msra.mxu0 0
        %378 = vmatprep.subr.bf16.mxu0 0
        %379 = vmatpush1.bf16.msra.mxu0 0
        %380 = vmatprep.subr.bf16.mxu0 0
        %381 = vmatpush1.bf16.msra.mxu0 0
        %382 = vmatprep.subr.bf16.mxu0 0
        %383 = vmatpush1.bf16.msra.mxu0 0
        %384 = vmatprep.subr.bf16.mxu0 0
        %385 = vmatpush1.bf16.msra.mxu0 0
        %386 = vmatprep.subr.bf16.mxu0 0
        %387 = vmatpush1.bf16.msra.mxu0 0
        %388 = vmatprep.subr.bf16.mxu0 0
        %389 = vmatpush1.bf16.msra.mxu0 0
        %390 = vmatprep.subr.bf16.mxu0 0
        %391 = vmatpush1.bf16.msra.mxu0 0
        %392 = vmatprep.subr.bf16.mxu0 0
        %393 = vmatpush1.bf16.msra.mxu0 0
        %394 = vmatprep.subr.bf16.mxu0 0
        %395 = vmatpush1.bf16.msra.mxu0 0
        %396 = vmatprep.subr.bf16.mxu0 0
        %397 = vmatpush1.bf16.msra.mxu0 0
        %398 = vmatprep.mubr.bf16.mxu0 0
        %399 = vmatmul.mubr.bf16.gmra.mrb[0].mxu0 %v364
        %v400 = vpop.f32.mrb[0].mxu0
        %v401 = vadd.f32 %v349, %v400
        %v402 = vpop.f32.mrb[0].mxu0
        %v403 = vpop.f32.mrb[0].mxu0
        %v404 = vpop.f32.mrb[0].mxu0
        %405 = vdwg.mxu0
        %v406 = vpack.c.bf16 %v401, %v401
        %408 = vrot.lane.b32.xlu0 %v406, 120
        %v409 = vpop.permute.xlu0 %408
        %410 = vrot.lane.b32.xlu0 %v406, 112
        %v411 = vpop.permute.xlu0 %410
        %412 = vrot.lane.b32.xlu0 %v406, 104
        %v413 = vpop.permute.xlu0 %412
        %414 = vrot.lane.b32.xlu0 %v406, 96
        %v415 = vpop.permute.xlu0 %414
        %vm416 = vcmask 64512
        %v418 = vsel %vm416, %v406, 0
        %v421 = vsel %vm416, %v415, 0
        %423 = vmatprep.subr.bf16.mxu0 0
        %424 = vmatpush1.bf16.xpose.msra.mxu0 %v421
        %425 = vmatprep.subr.bf16.mxu0 0
        %426 = vmatpush1.bf16.xpose.msra.mxu0 0
        %427 = vmatprep.subr.bf16.mxu0 0
        %428 = vmatpush1.bf16.xpose.msra.mxu0 0
        %429 = vmatprep.subr.bf16.mxu0 0
        %430 = vmatpush1.bf16.xpose.msra.mxu0 0
        %431 = vmatprep.subr.bf16.mxu0 0
        %432 = vmatpush1.bf16.xpose.msra.mxu0 0
        %433 = vmatprep.subr.bf16.mxu0 0
        %434 = vmatpush1.bf16.xpose.msra.mxu0 0
        %435 = vmatprep.subr.bf16.mxu0 0
        %436 = vmatpush1.bf16.xpose.msra.mxu0 0
        %437 = vmatprep.subr.bf16.mxu0 0
        %438 = vmatpush1.bf16.xpose.msra.mxu0 0
        %439 = vmatprep.subr.bf16.mxu0 0
        %440 = vmatpush1.bf16.xpose.msra.mxu0 0
        %441 = vmatprep.subr.bf16.mxu0 0
        %442 = vmatpush1.bf16.xpose.msra.mxu0 0
        %443 = vmatprep.subr.bf16.mxu0 0
        %444 = vmatpush1.bf16.xpose.msra.mxu0 0
        %445 = vmatprep.subr.bf16.mxu0 0
        %446 = vmatpush1.bf16.xpose.msra.mxu0 0
        %447 = vmatprep.subr.bf16.mxu0 0
        %448 = vmatpush1.bf16.xpose.msra.mxu0 0
        %449 = vmatprep.subr.bf16.mxu0 0
        %450 = vmatpush1.bf16.xpose.msra.mxu0 0
        %451 = vmatprep.subr.bf16.mxu0 0
        %452 = vmatpush1.bf16.xpose.msra.mxu0 0
        %453 = vmatprep.subr.bf16.mxu0 0
        %454 = vmatpush1.bf16.xpose.msra.mxu0 0
        %455 = vmatprep.mubr.bf16.mxu0 0
        %456 = vmatmul.mubr.bf16.gmra.mrb[0].mxu0 %v418
        %v457 = vpop.f32.mrb[0].mxu0
        %v458 = vadd.f32 0.0, %v457
        %v459 = vpop.f32.mrb[0].mxu0
        %v460 = vpop.f32.mrb[0].mxu0
        %v461 = vpop.f32.mrb[0].mxu0
        %462 = vdwg.mxu0
        %463 = vrot.lane.b32.xlu0 %v409, 96
        %v464 = vpop.permute.xlu0 %463
        %v466 = vsel %vm416, %v409, 0
        %v469 = vsel %vm416, %v464, 0
        %471 = vmatprep.subr.bf16.mxu0 0
        %472 = vmatpush1.bf16.xpose.msra.mxu0 %v469
        %473 = vmatprep.subr.bf16.mxu0 0
        %474 = vmatpush1.bf16.xpose.msra.mxu0 0
        %475 = vmatprep.subr.bf16.mxu0 0
        %476 = vmatpush1.bf16.xpose.msra.mxu0 0
        %477 = vmatprep.subr.bf16.mxu0 0
        %478 = vmatpush1.bf16.xpose.msra.mxu0 0
        %479 = vmatprep.subr.bf16.mxu0 0
        %480 = vmatpush1.bf16.xpose.msra.mxu0 0
        %481 = vmatprep.subr.bf16.mxu0 0
        %482 = vmatpush1.bf16.xpose.msra.mxu0 0
        %483 = vmatprep.subr.bf16.mxu0 0
        %484 = vmatpush1.bf16.xpose.msra.mxu0 0
        %485 = vmatprep.subr.bf16.mxu0 0
        %486 = vmatpush1.bf16.xpose.msra.mxu0 0
        %487 = vmatprep.subr.bf16.mxu0 0
        %488 = vmatpush1.bf16.xpose.msra.mxu0 0
        %489 = vmatprep.subr.bf16.mxu0 0
        %490 = vmatpush1.bf16.xpose.msra.mxu0 0
        %491 = vmatprep.subr.bf16.mxu0 0
        %492 = vmatpush1.bf16.xpose.msra.mxu0 0
        %493 = vmatprep.subr.bf16.mxu0 0
        %494 = vmatpush1.bf16.xpose.msra.mxu0 0
        %495 = vmatprep.subr.bf16.mxu0 0
        %496 = vmatpush1.bf16.xpose.msra.mxu0 0
        %497 = vmatprep.subr.bf16.mxu0 0
        %498 = vmatpush1.bf16.xpose.msra.mxu0 0
        %499 = vmatprep.subr.bf16.mxu0 0
        %500 = vmatpush1.bf16.xpose.msra.mxu0 0
        %501 = vmatprep.subr.bf16.mxu0 0
        %502 = vmatpush1.bf16.xpose.msra.mxu0 0
        %503 = vmatprep.mubr.bf16.mxu0 0
        %504 = vmatmul.mubr.bf16.gmra.mrb[0].mxu0 %v466
        %v505 = vpop.f32.mrb[0].mxu0
        %v506 = vadd.f32 0.0, %v505
        %v507 = vpop.f32.mrb[0].mxu0
        %v508 = vpop.f32.mrb[0].mxu0
        %v509 = vpop.f32.mrb[0].mxu0
        %510 = vdwg.mxu0
        %511 = vrot.lane.b32.xlu0 %v411, 96
        %v512 = vpop.permute.xlu0 %511
        %v514 = vsel %vm416, %v411, 0
        %v517 = vsel %vm416, %v512, 0
        %519 = vmatprep.subr.bf16.mxu0 0
        %520 = vmatpush1.bf16.xpose.msra.mxu0 %v517
        %521 = vmatprep.subr.bf16.mxu0 0
        %522 = vmatpush1.bf16.xpose.msra.mxu0 0
        %523 = vmatprep.subr.bf16.mxu0 0
        %524 = vmatpush1.bf16.xpose.msra.mxu0 0
        %525 = vmatprep.subr.bf16.mxu0 0
        %526 = vmatpush1.bf16.xpose.msra.mxu0 0
        %527 = vmatprep.subr.bf16.mxu0 0
        %528 = vmatpush1.bf16.xpose.msra.mxu0 0
        %529 = vmatprep.subr.bf16.mxu0 0
        %530 = vmatpush1.bf16.xpose.msra.mxu0 0
        %531 = vmatprep.subr.bf16.mxu0 0
        %532 = vmatpush1.bf16.xpose.msra.mxu0 0
        %533 = vmatprep.subr.bf16.mxu0 0
        %534 = vmatpush1.bf16.xpose.msra.mxu0 0
        %535 = vmatprep.subr.bf16.mxu0 0
        %536 = vmatpush1.bf16.xpose.msra.mxu0 0
        %537 = vmatprep.subr.bf16.mxu0 0
        %538 = vmatpush1.bf16.xpose.msra.mxu0 0
        %539 = vmatprep.subr.bf16.mxu0 0
        %540 = vmatpush1.bf16.xpose.msra.mxu0 0
        %541 = vmatprep.subr.bf16.mxu0 0
        %542 = vmatpush1.bf16.xpose.msra.mxu0 0
        %543 = vmatprep.subr.bf16.mxu0 0
        %544 = vmatpush1.bf16.xpose.msra.mxu0 0
        %545 = vmatprep.subr.bf16.mxu0 0
        %546 = vmatpush1.bf16.xpose.msra.mxu0 0
        %547 = vmatprep.subr.bf16.mxu0 0
        %548 = vmatpush1.bf16.xpose.msra.mxu0 0
        %549 = vmatprep.subr.bf16.mxu0 0
        %550 = vmatpush1.bf16.xpose.msra.mxu0 0
        %551 = vmatprep.mubr.bf16.mxu0 0
        %552 = vmatmul.mubr.bf16.gmra.mrb[0].mxu0 %v514
        %v553 = vpop.f32.mrb[0].mxu0
        %v554 = vadd.f32 0.0, %v553
        %v555 = vpop.f32.mrb[0].mxu0
        %v556 = vpop.f32.mrb[0].mxu0
        %v557 = vpop.f32.mrb[0].mxu0
        %558 = vdwg.mxu0
        %559 = vrot.lane.b32.xlu0 %v413, 96
        %v560 = vpop.permute.xlu0 %559
        %v562 = vsel %vm416, %v413, 0
        %v565 = vsel %vm416, %v560, 0
        %567 = vmatprep.subr.bf16.mxu0 0
        %568 = vmatpush1.bf16.xpose.msra.mxu0 %v565
        %569 = vmatprep.subr.bf16.mxu0 0
        %570 = vmatpush1.bf16.xpose.msra.mxu0 0
        %571 = vmatprep.subr.bf16.mxu0 0
        %572 = vmatpush1.bf16.xpose.msra.mxu0 0
        %573 = vmatprep.subr.bf16.mxu0 0
        %574 = vmatpush1.bf16.xpose.msra.mxu0 0
        %575 = vmatprep.subr.bf16.mxu0 0
        %576 = vmatpush1.bf16.xpose.msra.mxu0 0
        %577 = vmatprep.subr.bf16.mxu0 0
        %578 = vmatpush1.bf16.xpose.msra.mxu0 0
        %579 = vmatprep.subr.bf16.mxu0 0
        %580 = vmatpush1.bf16.xpose.msra.mxu0 0
        %581 = vmatprep.subr.bf16.mxu0 0
        %582 = vmatpush1.bf16.xpose.msra.mxu0 0
        %583 = vmatprep.subr.bf16.mxu0 0
        %584 = vmatpush1.bf16.xpose.msra.mxu0 0
        %585 = vmatprep.subr.bf16.mxu0 0
        %586 = vmatpush1.bf16.xpose.msra.mxu0 0
        %587 = vmatprep.subr.bf16.mxu0 0
        %588 = vmatpush1.bf16.xpose.msra.mxu0 0
        %589 = vmatprep.subr.bf16.mxu0 0
        %590 = vmatpush1.bf16.xpose.msra.mxu0 0
        %591 = vmatprep.subr.bf16.mxu0 0
        %592 = vmatpush1.bf16.xpose.msra.mxu0 0
        %593 = vmatprep.subr.bf16.mxu0 0
        %594 = vmatpush1.bf16.xpose.msra.mxu0 0
        %595 = vmatprep.subr.bf16.mxu0 0
        %596 = vmatpush1.bf16.xpose.msra.mxu0 0
        %597 = vmatprep.subr.bf16.mxu0 0
        %598 = vmatpush1.bf16.xpose.msra.mxu0 0
        %599 = vmatprep.mubr.bf16.mxu0 0
        %600 = vmatmul.mubr.bf16.gmra.mrb[0].mxu0 %v562
        %v601 = vpop.f32.mrb[0].mxu0
        %v602 = vadd.f32 0.0, %v601
        %v603 = vpop.f32.mrb[0].mxu0
        %v604 = vpop.f32.mrb[0].mxu0
        %v605 = vpop.f32.mrb[0].mxu0
        %606 = vdwg.mxu0
        %v607 = vmul.f32 %v458, 0.35355338
        %v608 = vmul.f32 %v506, 0.35355338
        %v609 = vmul.f32 %v554, 0.35355338
        %v610 = vmul.f32 %v602, 0.35355338
        %v611 = vlaneseq
        %v612 = vshrl.u32 %v611, 7
        %v613 = vsub.s32 0, %v612
        %v614 = vrot.slane %v341, %v613
        %v615 = vadd.f32 %v607, %v614
        %v616 = vadd.f32 %v608, %v614
        %v617 = vadd.f32 %v609, %v614
        %v618 = vadd.f32 %v610, %v614
        %v619 = vsel %vm416, %v615, -inf
        %620 = vmax.xlane.f32.xlu0 %v619
        %v621 = vpop.xlane.xlu0 %620
        %v622 = vsel %vm416, %v616, -inf
        %623 = vmax.xlane.f32.xlu0 %v622
        %v624 = vpop.xlane.xlu0 %623
        %v625 = vsel %vm416, %v617, -inf
        %626 = vmax.xlane.f32.xlu0 %v625
        %v627 = vpop.xlane.xlu0 %626
        %v628 = vsel %vm416, %v618, -inf
        %629 = vmax.xlane.f32.xlu0 %v628
        %v630 = vpop.xlane.xlu0 %629
        %v631 = vsub.f32 %v615, %v621
        %v632 = vsub.f32 %v616, %v624
        %v633 = vsub.f32 %v617, %v627
        %v634 = vsub.f32 %v618, %v630
        %v635 = vmul.f32 %v631, 1.442695
        %v636 = vpow.pop %v635
        %v637 = vmul.f32 %v632, 1.442695
        %v638 = vpow.pop %v637
        %v639 = vmul.f32 %v633, 1.442695
        %v640 = vpow.pop %v639
        %v641 = vmul.f32 %v634, 1.442695
        %v642 = vpow.pop %v641
        %v643 = vsel %vm416, %v636, 0.0
        %644 = vadd.xlane.f32.xlu0 %v643
        %v645 = vpop.xlane.xlu0 %644
        %v646 = vsel %vm416, %v638, 0.0
        %647 = vadd.xlane.f32.xlu0 %v646
        %v648 = vpop.xlane.xlu0 %647
        %v649 = vsel %vm416, %v640, 0.0
        %650 = vadd.xlane.f32.xlu0 %v649
        %v651 = vpop.xlane.xlu0 %650
        %v652 = vsel %vm416, %v642, 0.0
        %653 = vadd.xlane.f32.xlu0 %v652
        %v654 = vpop.xlane.xlu0 %653
        %v655 = vrcp.pop %v645
        %v656 = vrcp.pop %v648
        %v657 = vrcp.pop %v651
        %v658 = vrcp.pop %v654
        %v659 = vmul.f32 %v636, %v655
        %v660 = vmul.f32 %v638, %v656
        %v661 = vmul.f32 %v640, %v657
        %v662 = vmul.f32 %v642, %v658
        %v663 = vpack.c.bf16 %v659, %v659
        %v664 = vpack.c.bf16 %v660, %v660
        %v665 = vpack.c.bf16 %v661, %v661
        %v666 = vpack.c.bf16 %v662, %v662
        %667 = vrot.lane.b32.xlu0 %v406, 64
        %v668 = vpop.permute.xlu0 %667
        %v670 = vsel %vm416, %v663, 0
        %vm672 = vcmask 1043456
        %v674 = vsel %vm672, %v668, 0
        %676 = vmatprep.subr.bf16.mxu0 0
        %677 = vmatpush1.bf16.msra.mxu0 %v674
        %678 = vmatprep.subr.bf16.mxu0 0
        %679 = vmatpush1.bf16.msra.mxu0 0
        %680 = vmatprep.subr.bf16.mxu0 0
        %681 = vmatpush1.bf16.msra.mxu0 0
        %682 = vmatprep.subr.bf16.mxu0 0
        %683 = vmatpush1.bf16.msra.mxu0 0
        %684 = vmatprep.subr.bf16.mxu0 0
        %685 = vmatpush1.bf16.msra.mxu0 0
        %686 = vmatprep.subr.bf16.mxu0 0
        %687 = vmatpush1.bf16.msra.mxu0 0
        %688 = vmatprep.subr.bf16.mxu0 0
        %689 = vmatpush1.bf16.msra.mxu0 0
        %690 = vmatprep.subr.bf16.mxu0 0
        %691 = vmatpush1.bf16.msra.mxu0 0
        %692 = vmatprep.subr.bf16.mxu0 0
        %693 = vmatpush1.bf16.msra.mxu0 0
        %694 = vmatprep.subr.bf16.mxu0 0
        %695 = vmatpush1.bf16.msra.mxu0 0
        %696 = vmatprep.subr.bf16.mxu0 0
        %697 = vmatpush1.bf16.msra.mxu0 0
        %698 = vmatprep.subr.bf16.mxu0 0
        %699 = vmatpush1.bf16.msra.mxu0 0
        %700 = vmatprep.subr.bf16.mxu0 0
        %701 = vmatpush1.bf16.msra.mxu0 0
        %702 = vmatprep.subr.bf16.mxu0 0
        %703 = vmatpush1.bf16.msra.mxu0 0
        %704 = vmatprep.subr.bf16.mxu0 0
        %705 = vmatpush1.bf16.msra.mxu0 0
        %706 = vmatprep.subr.bf16.mxu0 0
        %707 = vmatpush1.bf16.msra.mxu0 0
        %708 = vmatprep.mubr.bf16.mxu0 0
        %709 = vmatmul.mubr.bf16.gmra.mrb[0].mxu0 %v670
        %v710 = vpop.f32.mrb[0].mxu0
        %v711 = vadd.f32 0.0, %v710
        %v712 = vpop.f32.mrb[0].mxu0
        %v713 = vpop.f32.mrb[0].mxu0
        %v714 = vpop.f32.mrb[0].mxu0
        %715 = vdwg.mxu0
        %716 = vrot.lane.b32.xlu0 %v409, 64
        %v717 = vpop.permute.xlu0 %716
        %v719 = vsel %vm416, %v664, 0
        %v722 = vsel %vm672, %v717, 0
        %724 = vmatprep.subr.bf16.mxu0 0
        %725 = vmatpush1.bf16.msra.mxu0 %v722
        %726 = vmatprep.subr.bf16.mxu0 0
        %727 = vmatpush1.bf16.msra.mxu0 0
        %728 = vmatprep.subr.bf16.mxu0 0
        %729 = vmatpush1.bf16.msra.mxu0 0
        %730 = vmatprep.subr.bf16.mxu0 0
        %731 = vmatpush1.bf16.msra.mxu0 0
        %732 = vmatprep.subr.bf16.mxu0 0
        %733 = vmatpush1.bf16.msra.mxu0 0
        %734 = vmatprep.subr.bf16.mxu0 0
        %735 = vmatpush1.bf16.msra.mxu0 0
        %736 = vmatprep.subr.bf16.mxu0 0
        %737 = vmatpush1.bf16.msra.mxu0 0
        %738 = vmatprep.subr.bf16.mxu0 0
        %739 = vmatpush1.bf16.msra.mxu0 0
        %740 = vmatprep.subr.bf16.mxu0 0
        %741 = vmatpush1.bf16.msra.mxu0 0
        %742 = vmatprep.subr.bf16.mxu0 0
        %743 = vmatpush1.bf16.msra.mxu0 0
        %744 = vmatprep.subr.bf16.mxu0 0
        %745 = vmatpush1.bf16.msra.mxu0 0
        %746 = vmatprep.subr.bf16.mxu0 0
        %747 = vmatpush1.bf16.msra.mxu0 0
        %748 = vmatprep.subr.bf16.mxu0 0
        %749 = vmatpush1.bf16.msra.mxu0 0
        %750 = vmatprep.subr.bf16.mxu0 0
        %751 = vmatpush1.bf16.msra.mxu0 0
        %752 = vmatprep.subr.bf16.mxu0 0
        %753 = vmatpush1.bf16.msra.mxu0 0
        %754 = vmatprep.subr.bf16.mxu0 0
        %755 = vmatpush1.bf16.msra.mxu0 0
        %756 = vmatprep.mubr.bf16.mxu0 0
        %757 = vmatmul.mubr.bf16.gmra.mrb[0].mxu0 %v719
        %v758 = vpop.f32.mrb[0].mxu0
        %v759 = vadd.f32 0.0, %v758
        %v760 = vpop.f32.mrb[0].mxu0
        %v761 = vpop.f32.mrb[0].mxu0
        %v762 = vpop.f32.mrb[0].mxu0
        %763 = vdwg.mxu0
        %764 = vrot.lane.b32.xlu0 %v411, 64
        %v765 = vpop.permute.xlu0 %764
        %v767 = vsel %vm416, %v665, 0
        %v770 = vsel %vm672, %v765, 0
        %772 = vmatprep.subr.bf16.mxu0 0
        %773 = vmatpush1.bf16.msra.mxu0 %v770
        %774 = vmatprep.subr.bf16.mxu0 0
        %775 = vmatpush1.bf16.msra.mxu0 0
        %776 = vmatprep.subr.bf16.mxu0 0
        %777 = vmatpush1.bf16.msra.mxu0 0
        %778 = vmatprep.subr.bf16.mxu0 0
        %779 = vmatpush1.bf16.msra.mxu0 0
        %780 = vmatprep.subr.bf16.mxu0 0
        %781 = vmatpush1.bf16.msra.mxu0 0
        %782 = vmatprep.subr.bf16.mxu0 0
        %783 = vmatpush1.bf16.msra.mxu0 0
        %784 = vmatprep.subr.bf16.mxu0 0
        %785 = vmatpush1.bf16.msra.mxu0 0
        %786 = vmatprep.subr.bf16.mxu0 0
        %787 = vmatpush1.bf16.msra.mxu0 0
        %788 = vmatprep.subr.bf16.mxu0 0
        %789 = vmatpush1.bf16.msra.mxu0 0
        %790 = vmatprep.subr.bf16.mxu0 0
        %791 = vmatpush1.bf16.msra.mxu0 0
        %792 = vmatprep.subr.bf16.mxu0 0
        %793 = vmatpush1.bf16.msra.mxu0 0
        %794 = vmatprep.subr.bf16.mxu0 0
        %795 = vmatpush1.bf16.msra.mxu0 0
        %796 = vmatprep.subr.bf16.mxu0 0
        %797 = vmatpush1.bf16.msra.mxu0 0
        %798 = vmatprep.subr.bf16.mxu0 0
        %799 = vmatpush1.bf16.msra.mxu0 0
        %800 = vmatprep.subr.bf16.mxu0 0
        %801 = vmatpush1.bf16.msra.mxu0 0
        %802 = vmatprep.subr.bf16.mxu0 0
        %803 = vmatpush1.bf16.msra.mxu0 0
        %804 = vmatprep.mubr.bf16.mxu0 0
        %805 = vmatmul.mubr.bf16.gmra.mrb[0].mxu0 %v767
        %v806 = vpop.f32.mrb[0].mxu0
        %v807 = vadd.f32 0.0, %v806
        %v808 = vpop.f32.mrb[0].mxu0
        %v809 = vpop.f32.mrb[0].mxu0
        %v810 = vpop.f32.mrb[0].mxu0
        %811 = vdwg.mxu0
        %812 = vrot.lane.b32.xlu0 %v413, 64
        %v813 = vpop.permute.xlu0 %812
        %v815 = vsel %vm416, %v666, 0
        %v818 = vsel %vm672, %v813, 0
        %820 = vmatprep.subr.bf16.mxu0 0
        %821 = vmatpush1.bf16.msra.mxu0 %v818
        %822 = vmatprep.subr.bf16.mxu0 0
        %823 = vmatpush1.bf16.msra.mxu0 0
        %824 = vmatprep.subr.bf16.mxu0 0
        %825 = vmatpush1.bf16.msra.mxu0 0
        %826 = vmatprep.subr.bf16.mxu0 0
        %827 = vmatpush1.bf16.msra.mxu0 0
        %828 = vmatprep.subr.bf16.mxu0 0
        %829 = vmatpush1.bf16.msra.mxu0 0
        %830 = vmatprep.subr.bf16.mxu0 0
        %831 = vmatpush1.bf16.msra.mxu0 0
        %832 = vmatprep.subr.bf16.mxu0 0
        %833 = vmatpush1.bf16.msra.mxu0 0
        %834 = vmatprep.subr.bf16.mxu0 0
        %835 = vmatpush1.bf16.msra.mxu0 0
        %836 = vmatprep.subr.bf16.mxu0 0
        %837 = vmatpush1.bf16.msra.mxu0 0
        %838 = vmatprep.subr.bf16.mxu0 0
        %839 = vmatpush1.bf16.msra.mxu0 0
        %840 = vmatprep.subr.bf16.mxu0 0
        %841 = vmatpush1.bf16.msra.mxu0 0
        %842 = vmatprep.subr.bf16.mxu0 0
        %843 = vmatpush1.bf16.msra.mxu0 0
        %844 = vmatprep.subr.bf16.mxu0 0
        %845 = vmatpush1.bf16.msra.mxu0 0
        %846 = vmatprep.subr.bf16.mxu0 0
        %847 = vmatpush1.bf16.msra.mxu0 0
        %848 = vmatprep.subr.bf16.mxu0 0
        %849 = vmatpush1.bf16.msra.mxu0 0
        %850 = vmatprep.subr.bf16.mxu0 0
        %851 = vmatpush1.bf16.msra.mxu0 0
        %852 = vmatprep.mubr.bf16.mxu0 0
        %853 = vmatmul.mubr.bf16.gmra.mrb[0].mxu0 %v815
        %v854 = vpop.f32.mrb[0].mxu0
        %v855 = vadd.f32 0.0, %v854
        %v856 = vpop.f32.mrb[0].mxu0
        %v857 = vpop.f32.mrb[0].mxu0
        %v858 = vpop.f32.mrb[0].mxu0
        %859 = vdwg.mxu0
        %v860 = vpack.c.bf16 %v711, %v711
        %v861 = vpack.c.bf16 %v759, %v759
        %v862 = vpack.c.bf16 %v807, %v807
        %v863 = vpack.c.bf16 %v855, %v855
        %865 = vrot.lane.b32.xlu0 %v861, 8
        %v866 = vpop.permute.xlu0 %865
        %868 = vrot.lane.b32.xlu0 %v862, 16
        %v869 = vpop.permute.xlu0 %868
        %871 = vrot.lane.b32.xlu0 %v863, 24
        %v872 = vpop.permute.xlu0 %871
        %v875 = vsel %vm416, %v860, %v866
        %vm876 = vcmask 130048
        %v878 = vsel %vm876, %v875, %v869
        %vm879 = vcmask 195584
        %v881 = vsel %vm879, %v878, %v872
        %v882 = vld [vmem:[%s3] sm:$0xf]
        %v883 = vld [vmem:[%s3 + $0x4] sm:$0xf]
        %v884 = vld [vmem:[%s3 + $0x8] sm:$0xf]
        %v885 = vld [vmem:[%s3 + $0xc] sm:$0xf]
        %v886 = vlaneseq
        %v887 = vshrl.u32 %v886, 7
        %v888 = vsub.s32 1, %v887
        %v889 = vrot.slane %v340, %v888
        %v894 = vunpack.c.l.b16 %v882
        %v895 = vunpack.c.l.b16 %v883
        %v896 = vunpack.c.l.b16 %v884
        %v897 = vunpack.c.l.b16 %v885
        %v898 = vpack.c.b16 %v895, %v894
        %v899 = vpack.c.b16 %v897, %v896
        %v902 = vsel %vm362, %v881, 0
        %904 = vmatprep.subr.bf16.mxu0 0
        %905 = vmatpush1.bf16.msra.mxu0 %v898
        %906 = vmatprep.subr.bf16.mxu0 0
        %907 = vmatpush1.bf16.msra.mxu0 %v899
        %908 = vmatprep.subr.bf16.mxu0 0
        %909 = vmatpush1.bf16.msra.mxu0 0
        %910 = vmatprep.subr.bf16.mxu0 0
        %911 = vmatpush1.bf16.msra.mxu0 0
        %912 = vmatprep.subr.bf16.mxu0 0
        %913 = vmatpush1.bf16.msra.mxu0 0
        %914 = vmatprep.subr.bf16.mxu0 0
        %915 = vmatpush1.bf16.msra.mxu0 0
        %916 = vmatprep.subr.bf16.mxu0 0
        %917 = vmatpush1.bf16.msra.mxu0 0
        %918 = vmatprep.subr.bf16.mxu0 0
        %919 = vmatpush1.bf16.msra.mxu0 0
        %920 = vmatprep.subr.bf16.mxu0 0
        %921 = vmatpush1.bf16.msra.mxu0 0
        %922 = vmatprep.subr.bf16.mxu0 0
        %923 = vmatpush1.bf16.msra.mxu0 0
        %924 = vmatprep.subr.bf16.mxu0 0
        %925 = vmatpush1.bf16.msra.mxu0 0
        %926 = vmatprep.subr.bf16.mxu0 0
        %927 = vmatpush1.bf16.msra.mxu0 0
        %928 = vmatprep.subr.bf16.mxu0 0
        %929 = vmatpush1.bf16.msra.mxu0 0
        %930 = vmatprep.subr.bf16.mxu0 0
        %931 = vmatpush1.bf16.msra.mxu0 0
        %932 = vmatprep.subr.bf16.mxu0 0
        %933 = vmatpush1.bf16.msra.mxu0 0
        %934 = vmatprep.subr.bf16.mxu0 0
        %935 = vmatpush1.bf16.msra.mxu0 0
        %936 = vmatprep.mubr.bf16.mxu0 0
        %937 = vmatmul.mubr.bf16.gmra.mrb[0].mxu0 %v902
        %v938 = vpop.f32.mrb[0].mxu0
        %v939 = vadd.f32 %v889, %v938
        %v940 = vpop.f32.mrb[0].mxu0
        %v941 = vpop.f32.mrb[0].mxu0
        %v942 = vpop.f32.mrb[0].mxu0
        %943 = vdwg.mxu0
        %v944 = vadd.f32 %v338, %v939
        %v945 = vsel %vm362, %v944, 0.0
        %946 = vadd.xlane.f32.xlu0 %v945
        %v947 = vpop.xlane.xlu0 %946
        %v948 = vrcp.pop 32.0
        %v949 = vmul.f32 %v947, %v948
        %v950 = vsub.f32 %v944, %v949
        %v951 = vmul.f32 %v950, %v950
        %v952 = vsel %vm362, %v951, 0.0
        %953 = vadd.xlane.f32.xlu0 %v952
        %v954 = vpop.xlane.xlu0 %953
        %v955 = vmul.f32 %v954, %v948
        %v956 = vadd.f32 %v955, 1e-05
        %v957 = vrsqrt.pop %v956
        %v958 = vmul.f32 %v950, %v957
        %v959 = vlaneseq
        %v960 = vshrl.u32 %v959, 7
        %v961 = vsub.s32 2, %v960
        %v962 = vrot.slane %v340, %v961
        %v963 = vmul.f32 %v958, %v962
        %v964 = vlaneseq
        %v965 = vshrl.u32 %v964, 7
        %v966 = vsub.s32 3, %v965
        %v967 = vrot.slane %v340, %v966
        %v968 = vadd.f32 %v963, %v967
        %v969 = vpack.c.bf16 %v968, %v968
        %v970 = vld [vmem:[#allocation5] sm:$0xf]
        %v971 = vld [vmem:[#allocation5 + $0x4] sm:$0xf]
        %v972 = vld [vmem:[#allocation5 + $0x8] sm:$0xf]
        %v973 = vld [vmem:[#allocation5 + $0xc] sm:$0xf]
        %v974 = vlaneseq
        %v975 = vshrl.u32 %v974, 7
        %v976 = vsub.s32 4, %v975
        %v977 = vrot.slane %v340, %v976
        %v982 = vunpack.c.l.b16 %v970
        %v983 = vunpack.c.l.b16 %v971
        %v984 = vunpack.c.l.b16 %v972
        %v985 = vunpack.c.l.b16 %v973
        %v986 = vpack.c.b16 %v983, %v982
        %v987 = vpack.c.b16 %v985, %v984
        %v991 = vsel %vm362, %v969, 0
        %993 = vmatprep.subr.bf16.mxu0 0
        %994 = vmatpush1.bf16.msra.mxu0 %v986
        %995 = vmatprep.subr.bf16.mxu0 0
        %996 = vmatpush1.bf16.msra.mxu0 %v987
        %997 = vmatprep.subr.bf16.mxu0 0
        %998 = vmatpush1.bf16.msra.mxu0 0
        %999 = vmatprep.subr.bf16.mxu0 0
        %1000 = vmatpush1.bf16.msra.mxu0 0
        %1001 = vmatprep.subr.bf16.mxu0 0
        %1002 = vmatpush1.bf16.msra.mxu0 0
        %1003 = vmatprep.subr.bf16.mxu0 0
        %1004 = vmatpush1.bf16.msra.mxu0 0
        %1005 = vmatprep.subr.bf16.mxu0 0
        %1006 = vmatpush1.bf16.msra.mxu0 0
        %1007 = vmatprep.subr.bf16.mxu0 0
        %1008 = vmatpush1.bf16.msra.mxu0 0
        %1009 = vmatprep.subr.bf16.mxu0 0
        %1010 = vmatpush1.bf16.msra.mxu0 0
        %1011 = vmatprep.subr.bf16.mxu0 0
        %1012 = vmatpush1.bf16.msra.mxu0 0
        %1013 = vmatprep.subr.bf16.mxu0 0
        %1014 = vmatpush1.bf16.msra.mxu0 0
        %1015 = vmatprep.subr.bf16.mxu0 0
        %1016 = vmatpush1.bf16.msra.mxu0 0
        %1017 = vmatprep.subr.bf16.mxu0 0
        %1018 = vmatpush1.bf16.msra.mxu0 0
        %1019 = vmatprep.subr.bf16.mxu0 0
        %1020 = vmatpush1.bf16.msra.mxu0 0
        %1021 = vmatprep.subr.bf16.mxu0 0
        %1022 = vmatpush1.bf16.msra.mxu0 0
        %1023 = vmatprep.subr.bf16.mxu0 0
        %1024 = vmatpush1.bf16.msra.mxu0 0
        %1025 = vmatprep.mubr.bf16.mxu0 0
        %1026 = vmatmul.mubr.bf16.gmra.mrb[0].mxu0 %v991
        %v1027 = vpop.f32.mrb[0].mxu0
        %v1028 = vadd.f32 %v977, %v1027
        %v1029 = vpop.f32.mrb[0].mxu0
        %v1030 = vpop.f32.mrb[0].mxu0
        %v1031 = vpop.f32.mrb[0].mxu0
        %1032 = vdwg.mxu0
        %v1033 = vmul.f32 %v1028, %v1028
        %v1034 = vmul.f32 %v1028, %v1033
        %v1035 = vmul.f32 %v1034, 0.044715
        %v1036 = vadd.f32 %v1028, %v1035
        %v1037 = vmul.f32 %v1036, 0.7978846
        %v1038 = vtanh.pop %v1037
        %v1039 = vadd.f32 %v1038, 1.0
        %v1040 = vmul.f32 %v1039, 0.5
        %v1041 = vmul.f32 %v1028, %v1040
        %v1042 = vpack.c.bf16 %v1041, %v1041
        %v1043 = vld [vmem:[%s5] sm:$0xf]
        %v1044 = vld [vmem:[%s5 + $0x4] sm:$0xf]
        %v1045 = vld [vmem:[%s5 + $0x8] sm:$0xf]
        %v1046 = vld [vmem:[%s5 + $0xc] sm:$0xf]
        %v1047 = vld [vmem:[%s5 + $0x10] sm:$0xf]
        %v1048 = vld [vmem:[%s5 + $0x14] sm:$0xf]
        %v1049 = vld [vmem:[%s5 + $0x18] sm:$0xf]
        %v1050 = vld [vmem:[%s5 + $0x1c] sm:$0xf]
        %v1051 = vlaneseq
        %v1052 = vshrl.u32 %v1051, 7
        %v1053 = vsub.s32 5, %v1052
        %v1054 = vrot.slane %v340, %v1053
        %v1063 = vunpack.c.l.b16 %v1043
        %v1064 = vunpack.c.l.b16 %v1044
        %v1065 = vunpack.c.l.b16 %v1045
        %v1066 = vunpack.c.l.b16 %v1046
        %v1067 = vunpack.c.l.b16 %v1047
        %v1068 = vunpack.c.l.b16 %v1048
        %v1069 = vunpack.c.l.b16 %v1049
        %v1070 = vunpack.c.l.b16 %v1050
        %v1071 = vpack.c.b16 %v1064, %v1063
        %v1072 = vpack.c.b16 %v1066, %v1065
        %v1073 = vpack.c.b16 %v1068, %v1067
        %v1074 = vpack.c.b16 %v1070, %v1069
        %vm1079 = vcmask 523264
        %v1081 = vsel %vm1079, %v1042, 0
        %1083 = vmatprep.subr.bf16.mxu0 0
        %1084 = vmatpush1.bf16.msra.mxu0 %v1071
        %1085 = vmatprep.subr.bf16.mxu0 0
        %1086 = vmatpush1.bf16.msra.mxu0 %v1072
        %1087 = vmatprep.subr.bf16.mxu0 0
        %1088 = vmatpush1.bf16.msra.mxu0 %v1073
        %1089 = vmatprep.subr.bf16.mxu0 0
        %1090 = vmatpush1.bf16.msra.mxu0 %v1074
        %1091 = vmatprep.subr.bf16.mxu0 0
        %1092 = vmatpush1.bf16.msra.mxu0 0
        %1093 = vmatprep.subr.bf16.mxu0 0
        %1094 = vmatpush1.bf16.msra.mxu0 0
        %1095 = vmatprep.subr.bf16.mxu0 0
        %1096 = vmatpush1.bf16.msra.mxu0 0
        %1097 = vmatprep.subr.bf16.mxu0 0
        %1098 = vmatpush1.bf16.msra.mxu0 0
        %1099 = vmatprep.subr.bf16.mxu0 0
        %1100 = vmatpush1.bf16.msra.mxu0 0
        %1101 = vmatprep.subr.bf16.mxu0 0
        %1102 = vmatpush1.bf16.msra.mxu0 0
        %1103 = vmatprep.subr.bf16.mxu0 0
        %1104 = vmatpush1.bf16.msra.mxu0 0
        %1105 = vmatprep.subr.bf16.mxu0 0
        %1106 = vmatpush1.bf16.msra.mxu0 0
        %1107 = vmatprep.subr.bf16.mxu0 0
        %1108 = vmatpush1.bf16.msra.mxu0 0
        %1109 = vmatprep.subr.bf16.mxu0 0
        %1110 = vmatpush1.bf16.msra.mxu0 0
        %1111 = vmatprep.subr.bf16.mxu0 0
        %1112 = vmatpush1.bf16.msra.mxu0 0
        %1113 = vmatprep.subr.bf16.mxu0 0
        %1114 = vmatpush1.bf16.msra.mxu0 0
        %1115 = vmatprep.mubr.bf16.mxu0 0
        %1116 = vmatmul.mubr.bf16.gmra.mrb[0].mxu0 %v1081
        %v1117 = vpop.f32.mrb[0].mxu0
        %v1118 = vadd.f32 %v1054, %v1117
        %v1119 = vpop.f32.mrb[0].mxu0
        %v1120 = vpop.f32.mrb[0].mxu0
        %v1121 = vpop.f32.mrb[0].mxu0
        %1122 = vdwg.mxu0
        %v1123 = vadd.f32 %v968, %v1118
        %v1124 = vsel %vm362, %v1123, 0.0
        %1125 = vadd.xlane.f32.xlu0 %v1124
        %v1126 = vpop.xlane.xlu0 %1125
        %v1127 = vmul.f32 %v1126, %v948
        %v1128 = vsub.f32 %v1123, %v1127
        %v1129 = vmul.f32 %v1128, %v1128
        %v1130 = vsel %vm362, %v1129, 0.0
        %1131 = vadd.xlane.f32.xlu0 %v1130
        %v1132 = vpop.xlane.xlu0 %1131
        %v1133 = vmul.f32 %v1132, %v948
        %v1134 = vadd.f32 %v1133, 1e-05
        %v1135 = vrsqrt.pop %v1134
        %v1136 = vmul.f32 %v1128, %v1135
        %v1137 = vlaneseq
        %v1138 = vshrl.u32 %v1137, 7
        %v1139 = vsub.s32 6, %v1138
        %v1140 = vrot.slane %v340, %v1139
        %v1141 = vmul.f32 %v1136, %v1140
        %v1142 = vlaneseq
        %v1143 = vshrl.u32 %v1142, 7
        %v1144 = vsub.s32 7, %v1143
        %v1145 = vrot.slane %v340, %v1144
        %v1146 = vadd.f32 %v1141, %v1145
        %v1148 = vrot.slane %v341, 1
        %v1149 = vsel %vm416, %v1148, 0
        %1151 = vmatprep.subr.mxu0 0.0
        %1152 = vmatpush1.msra.mxu0 %v1146
        %1153 = vmatprep.subr.mxu0 0.0
        %1154 = vmatpush1.msra.mxu0 0.0
        %1155 = vmatprep.subr.mxu0 0.0
        %1156 = vmatpush1.msra.mxu0 0.0
        %1157 = vmatprep.subr.mxu0 0.0
        %1158 = vmatpush1.msra.mxu0 0.0
        %1159 = vmatprep.subr.mxu0 0.0
        %1160 = vmatpush1.msra.mxu0 0.0
        %1161 = vmatprep.subr.mxu0 0.0
        %1162 = vmatpush1.msra.mxu0 0.0
        %1163 = vmatprep.subr.mxu0 0.0
        %1164 = vmatpush1.msra.mxu0 0.0
        %1165 = vmatprep.subr.mxu0 0.0
        %1166 = vmatpush1.msra.mxu0 0.0
        %1167 = vmatprep.subr.mxu0 0.0
        %1168 = vmatpush1.msra.mxu0 0.0
        %1169 = vmatprep.subr.mxu0 0.0
        %1170 = vmatpush1.msra.mxu0 0.0
        %1171 = vmatprep.subr.mxu0 0.0
        %1172 = vmatpush1.msra.mxu0 0.0
        %1173 = vmatprep.subr.mxu0 0.0
        %1174 = vmatpush1.msra.mxu0 0.0
        %1175 = vmatprep.subr.mxu0 0.0
        %1176 = vmatpush1.msra.mxu0 0.0
        %1177 = vmatprep.subr.mxu0 0.0
        %1178 = vmatpush1.msra.mxu0 0.0
        %1179 = vmatprep.subr.mxu0 0.0
        %1180 = vmatpush1.msra.mxu0 0.0
        %1181 = vmatprep.subr.mxu0 0.0
        %1182 = vmatpush1.msra.mxu0 0.0
        %1183 = vmatprep.subr.mxu0 0.0
        %1184 = vmatpush1.msra.mxu0 0.0
        %1185 = vmatprep.subr.mxu0 0.0
        %1186 = vmatpush1.msra.mxu0 0.0
        %1187 = vmatprep.subr.mxu0 0.0
        %1188 = vmatpush1.msra.mxu0 0.0
        %1189 = vmatprep.subr.mxu0 0.0
        %1190 = vmatpush1.msra.mxu0 0.0
        %1191 = vmatprep.subr.mxu0 0.0
        %1192 = vmatpush1.msra.mxu0 0.0
        %1193 = vmatprep.subr.mxu0 0.0
        %1194 = vmatpush1.msra.mxu0 0.0
        %1195 = vmatprep.subr.mxu0 0.0
        %1196 = vmatpush1.msra.mxu0 0.0
        %1197 = vmatprep.subr.mxu0 0.0
        %1198 = vmatpush1.msra.mxu0 0.0
        %1199 = vmatprep.subr.mxu0 0.0
        %1200 = vmatpush1.msra.mxu0 0.0
        %1201 = vmatprep.subr.mxu0 0.0
        %1202 = vmatpush1.msra.mxu0 0.0
        %1203 = vmatprep.subr.mxu0 0.0
        %1204 = vmatpush1.msra.mxu0 0.0
        %1205 = vmatprep.subr.mxu0 0.0
        %1206 = vmatpush1.msra.mxu0 0.0
        %1207 = vmatprep.subr.mxu0 0.0
        %1208 = vmatpush1.msra.mxu0 0.0
        %1209 = vmatprep.subr.mxu0 0.0
        %1210 = vmatpush1.msra.mxu0 0.0
        %1211 = vmatprep.subr.mxu0 0.0
        %1212 = vmatpush1.msra.mxu0 0.0
        %1213 = vmatprep.subr.mxu0 0.0
        %1214 = vmatpush1.msra.mxu0 0.0
        %1215 = vmatprep.mubr.f32.mxu0 0.0
        %1216 = vmatmul.mubr.f32.gmra.mrb[0].mxu0 %v1149
        %v1217 = vpop.f32.mrb[0].mxu0
        %v1218 = vadd.f32 0.0, %v1217
        %v1219 = vpop.f32.mrb[0].mxu0
        %1220 = vdwg.mxu0
        %v1221 = vmul.f32 %v1218, %v1218
        %vm1222 = vcmask 253952
        %v1223 = vsel %vm1222, %v1221, 0.0
        %1224 = vadd.xlane.f32.xlu0 %v1223
        %v1225 = vpop.xlane.xlu0 %1224
        %v1226 = vmax.f32 %v1225, 1e-24
        %v1227 = vrsqrt.pop %v1226
        %v1228 = vmul.f32 %v1218, %v1227
        %1229 = vst.msk [vmem:[%s332] sm:$0x1] %vm1222, %v1228
        %s1230 = sand.u32 %s190, 1
        %s1231 = scalar_lea.sflag [#allocation4], %s1230
        %s1232 = sand.u32 %s190, 1
        %s1233 = scalar_lea.vmem [#allocation8], %s1232
        // Predicated region
        $region61: #{tpu_custom_call.1} parent=47 // pred_check
          %p1234 = pneg %p200
        $region62: #{tpu_custom_call.1} parent=47 // pred_check_branch
          %1236 = sbr.rel (%p1234) target = $region64
        $region63: #{tpu_custom_call.1} parent=47 // pred_region
          %s1238 = ssub.s32 16, 16
          %1239 = vsyncadd %s1231, %s1238
          %s1240 = smul.addr %s25, 16
          %s1241 = scalar_lea.hbm %s7, %s1240
          %s1243 = sshll.u32 %s1233, 4
          %s1244 = int_to_ptr.vmem [resolvable:$true] %s1243
          %1246 = dma.vmem_to_hbm [thread:$0]  %s1244, 16, %s1241, %s1231
        $region64: #{tpu_custom_call.1} parent=47 // pred_fallthru
          _
      $region48: #{tpu_custom_call.1} parent=5 // pred_fallthru
        _
      %p1247 = scmp.le.s32.totalorder 2, %s20
      // Predicated region
      $region65: #{tpu_custom_call.1} parent=5 // pred_check
        %p1248 = pneg %p1247
      $region66: #{tpu_custom_call.1} parent=5 // pred_check_branch
        %1250 = sbr.rel (%p1248) target = $region68
      $region67: #{tpu_custom_call.1} parent=5 // pred_region
        %s1251 = ssub.s32 %s20, 2
        // Predicated region
        $region69: #{tpu_custom_call.1} parent=67 // pred_check
          %p1252 = pneg %p206
        $region70: #{tpu_custom_call.1} parent=67 // pred_check_branch
          %1254 = sbr.rel (%p1252) target = $region72
        $region71: #{tpu_custom_call.1} parent=67 // pred_region
          %s1255 = sand.u32 %s191, 1
          %s1256 = scalar_lea.sflag [#allocation4], %s1255
          %s1257 = sand.u32 %s191, 1
          %s1258 = scalar_lea.vmem [#allocation8], %s1257
          %1259 = dma.done %s1256, 16
        $region72: #{tpu_custom_call.1} parent=67 // pred_fallthru
          _
      $region68: #{tpu_custom_call.1} parent=5 // pred_fallthru
        _
    $region6: #{tpu_custom_call.1} parent=1 // loop_footer
      %s24 = sadd.s32 1, %s20
    $region7: #{tpu_custom_call.1} parent=1 // loop_footer_branch
      %19 = sbr.rel target = $region3
    $region8: #{tpu_custom_call.1} parent=1 // loop_exit
      _
    %1260 = vsyncpa [#allocation3], 1
    %s1261 = scalar_lea.sflag [#allocation3], 1
    %1262 = vsyncpa %s1261, 1
    %1263 = vsyncpa [#allocation6], 1
    %1264 = vsyncpa [#allocation4], 1
    %s1265 = scalar_lea.sflag [#allocation4], 1
    %1266 = vsyncpa %s1265, 1

</llo_original>
